<compile_context>
chip_gen: v6e
topology: v6e:2x2x1
jax: 0.10.0
libtpu: 0.0.40
codegen_flags: <defaults>
</compile_context>

<pallas_src>
import jax
import jax.numpy as jnp
from jax.experimental import pallas as pl
from jax.experimental.pallas import tpu as pltpu

# synthetic model config (the original pulls these from model_config/hyperparams)
MODEL_CONFIG = {"measure_dim": 32, "embedd_dim": 128, "drop_prob": 0.1}
HYPERPARAMS = {"max_seq_len": 64}
LN_EPS = 1e-5  # torch.nn.LayerNorm default


def _lane_pad(n):
    return pl.cdiv(n, 128) * 128


def nicu_embeddings_kernel(x_ref, t_ref, wm_ref, g_ref, b_ref, o_ref):
    TB, S, M = x_ref.shape
    D = wm_ref.shape[1]

    # Conv1d(kernel_size=1) over the measurement dim == pointwise linear.
    # Collapse (TB, S) so the whole block is one MXU matmul (TB*S, M) @ (M, D).
    x2 = x_ref[...].reshape(TB * S, M)
    m = jnp.dot(
        x2,
        wm_ref[...],
        preferred_element_type=jnp.float32,
        precision=jax.lax.Precision.HIGHEST,   # f32 parity with torch Conv1d
    ).reshape(TB, S, D)

    # time_idx == arange(S) for every batch row, so the Embedding lookup is
    # just rows [0:S] of the table; the Conv1d bias was pre-folded into t_ref
    # on the host.  Broadcasts over the batch-tile dim.
    emb = m + t_ref[...]                                       # (TB, S, D)

    # LayerNorm over the embedding (lane) dim, fused scale/shift epilogue.
    mu = jnp.mean(emb, axis=-1, keepdims=True)                 # XLU reduce
    var = jnp.mean(jnp.square(emb - mu), axis=-1, keepdims=True)
    inv = jax.lax.rsqrt(var + LN_EPS)                          # EUP
    scale = inv * g_ref[...]                                   # (TB, S, D)
    shift = b_ref[...] - mu * scale
    # TODO(synk): train-mode Dropout (pltpu.prng_*) not implemented; eval-mode
    # dropout is the identity, matching inference semantics.
    o_ref[...] = (emb * scale + shift).astype(o_ref.dtype)


def nicu_embeddings(x, t_table, w_m, b_m, gamma, beta, *,
                    block_b=128, out_dtype=None,
                    tile_vmem_budget_bytes=16 * 1024 * 1024):
    """x: (B, S, M); t_table: (S, D); w_m: (M, D) (Conv1d weight as (in, out));
    b_m/gamma/beta: (1, D).  out_dtype defaults to float32; pass jnp.bfloat16
    to halve output HBM traffic if the model tolerates it."""
    B, S, M = x.shape
    D = w_m.shape[1]
    out_dtype = jnp.dtype(out_dtype) if out_dtype is not None else jnp.dtype(jnp.float32)
    x_itemsize = jnp.dtype(x.dtype).itemsize
    out_itemsize = out_dtype.itemsize

    # --- batch-tile sizing (VMEM budget for the pipelined, double-buffered
    # x/out tiles; x lane-pads M up to 128 inside VMEM) ----------------------
    bytes_per_row = 2 * S * (_lane_pad(M) * x_itemsize + _lane_pad(D) * out_itemsize)
    tb = max(1, min(block_b, B, tile_vmem_budget_bytes // bytes_per_row))
    # Keep the grid >= 2 steps when B allows so v7x's second TensorCore is not
    # idle (no effect on single-TC v5e/v6e).
    half_b = -(-B // 2)
    if B >= 2 and tb > half_b:
        tb = half_b
    nb = pl.cdiv(B, tb)

    # Pad the batch so every grid step writes a full tile; per-row LayerNorm
    # means padded rows cannot contaminate valid rows, and they are sliced off.
    Bp = nb * tb
    xp = x if Bp == B else jnp.pad(x, ((0, Bp - B), (0, 0), (0, 0)))

    # Fold the Conv1d bias into the time-embedding rows on the host.
    t_plus_b = (t_table + b_m).astype(jnp.float32)

    tile_bytes = tb * bytes_per_row
    # Explicit scoped-VMEM limit: tiles + headroom for in-kernel temps and the
    # small shared constants; capped to stay inside v7x's 64 MiB physical VMEM.
    vmem_limit = int(min(48 * 1024 * 1024, 2 * tile_bytes + 8 * 1024 * 1024))

    cost = pl.CostEstimate(
        flops=2 * B * S * M * D + 10 * B * S * D,
        transcendentals=B * S,
        bytes_accessed=(B * S * M * x_itemsize + B * S * D * out_itemsize
                        + (S * D + M * D + 3 * D) * 4),
    )

    out_p = pl.pallas_call(
        nicu_embeddings_kernel,
        out_shape=jax.ShapeDtypeStruct((Bp, S, D), out_dtype),
        grid=(nb,),
        in_specs=[
            pl.BlockSpec((tb, S, M), lambda i: (i, 0, 0)),   # x tile (pipelined)
            pl.BlockSpec((S, D), lambda i: (0, 0)),          # time table (+ conv bias)
            pl.BlockSpec((M, D), lambda i: (0, 0)),          # conv1d weight (in, out)
            pl.BlockSpec((1, D), lambda i: (0, 0)),          # LN gamma
            pl.BlockSpec((1, D), lambda i: (0, 0)),          # LN beta
        ],
        out_specs=pl.BlockSpec((tb, S, D), lambda i: (i, 0, 0)),
        compiler_params=pltpu.CompilerParams(
            dimension_semantics=("parallel",),               # megacore on v7x
            vmem_limit_bytes=vmem_limit,
        ),
        cost_estimate=cost,
    )(xp, t_plus_b, w_m, gamma, beta)
    return out_p if Bp == B else out_p[:B]


def reference(x, t_table, w_m, b_m, gamma, beta):
    m = jnp.einsum("bsm,md->bsd", x, w_m,
                   precision=jax.lax.Precision.HIGHEST) + b_m
    emb = m + t_table[None]
    mu = jnp.mean(emb, axis=-1, keepdims=True)
    var = jnp.mean(jnp.square(emb - mu), axis=-1, keepdims=True)
    return (emb - mu) / jnp.sqrt(var + LN_EPS) * gamma + beta


if __name__ == "__main__":
    B = 8
    S = HYPERPARAMS["max_seq_len"]
    M = MODEL_CONFIG["measure_dim"]
    D = MODEL_CONFIG["embedd_dim"]

    key = jax.random.PRNGKey(0)
    kx, kt, kw, kb, kg, kbt = jax.random.split(key, 6)

    x = jax.random.normal(kx, (B, S, M), dtype=jnp.float32)
    # nn.Embedding default init: N(0, 1)
    t_table = jax.random.normal(kt, (S, D), dtype=jnp.float32)
    # nn.Conv1d(k=1) default init: U(-1/sqrt(fan_in), 1/sqrt(fan_in)); stored (in, out)
    bound = 1.0 / float(jnp.sqrt(jnp.float32(M)))
    w_m = jax.random.uniform(kw, (M, D), jnp.float32, -bound, bound)
    b_m = jax.random.uniform(kb, (1, D), jnp.float32, -bound, bound)
    # LayerNorm params (perturbed from the 1/0 defaults to make the test meaningful)
    gamma = 1.0 + 0.1 * jax.random.normal(kg, (1, D), dtype=jnp.float32)
    beta = 0.1 * jax.random.normal(kbt, (1, D), dtype=jnp.float32)

    out = jax.block_until_ready(nicu_embeddings(x, t_table, w_m, b_m, gamma, beta))
    ref = reference(x, t_table, w_m, b_m, gamma, beta)

    assert out.shape == (B, S, D), out.shape
    err = float(jnp.max(jnp.abs(out - ref)))
    assert jnp.allclose(out, ref, atol=1e-4, rtol=1e-4), err
    print("KERNEL_OK")
</pallas_src>

<mosaic_0001>
module attributes {stable_mosaic.version = 11 : i64} {
  func.func @nicu_embeddings_kernel(%arg0: i32, %arg1: memref<4x64x32xf32, #tpu.memory_space<vmem>>, %arg2: memref<64x128xf32, #tpu.memory_space<vmem>>, %arg3: memref<32x128xf32, #tpu.memory_space<vmem>>, %arg4: memref<1x128xf32, #tpu.memory_space<vmem>>, %arg5: memref<1x128xf32, #tpu.memory_space<vmem>>, %arg6: memref<4x64x128xf32, #tpu.memory_space<vmem>>) attributes {dimension_semantics = [#tpu.dimension_semantics<parallel>], iteration_bounds = array<i64: 2>, scalar_prefetch = 0 : i64, scratch_operands = 0 : i64, tpu.core_type = #tpu.core_type<tc>, window_params = [{transform_indices = @transform_0, window_bounds = array<i64: 4, 64, 32>}, {pipeline_mode = #tpu.pipeline_mode<synchronous>, transform_indices = @transform_1, window_bounds = array<i64: 64, 128>}, {pipeline_mode = #tpu.pipeline_mode<synchronous>, transform_indices = @transform_2, window_bounds = array<i64: 32, 128>}, {pipeline_mode = #tpu.pipeline_mode<synchronous>, transform_indices = @transform_3, window_bounds = array<i64: 1, 128>}, {pipeline_mode = #tpu.pipeline_mode<synchronous>, transform_indices = @transform_4, window_bounds = array<i64: 1, 128>}, {transform_indices = @transform_5, window_bounds = array<i64: 4, 64, 128>}]} {
    %c0 = arith.constant 0 : index
    %c0_0 = arith.constant 0 : index
    %c0_1 = arith.constant 0 : index
    %0 = vector.load %arg1[%c0, %c0_0, %c0_1] : memref<4x64x32xf32, #tpu.memory_space<vmem>>, vector<4x64x32xf32>
    %1 = vector.shape_cast %0 : vector<4x64x32xf32> to vector<256x32xf32>
    %c0_2 = arith.constant 0 : index
    %c0_3 = arith.constant 0 : index
    %2 = vector.load %arg3[%c0_2, %c0_3] : memref<32x128xf32, #tpu.memory_space<vmem>>, vector<32x128xf32>
    %cst = arith.constant dense<0.000000e+00> : vector<256x128xf32>
    %3 = tpu.matmul %1, %2, %cst {dimension_numbers = #tpu.dot_dimension_numbers<[1], [0], [0], [1], [0, 0, 1, 1], [], []>, precision = #tpu.contract_precision<fp32>} : vector<256x32xf32>, vector<32x128xf32>, vector<256x128xf32> -> vector<256x128xf32>
    %4 = vector.shape_cast %3 : vector<256x128xf32> to vector<4x64x128xf32>
    %c0_4 = arith.constant 0 : index
    %c0_5 = arith.constant 0 : index
    %5 = vector.load %arg2[%c0_4, %c0_5] : memref<64x128xf32, #tpu.memory_space<vmem>>, vector<64x128xf32>
    %6 = vector.shape_cast %5 : vector<64x128xf32> to vector<1x64x128xf32>
    %7 = vector.broadcast %6 : vector<1x64x128xf32> to vector<4x64x128xf32>
    %8 = arith.addf %4, %7 : vector<4x64x128xf32>
    %cst_6 = arith.constant dense<0.000000e+00> : vector<4x64xf32>
    %9 = vector.multi_reduction <add>, %8, %cst_6 [2] : vector<4x64x128xf32> to vector<4x64xf32>
    %10 = vector.shape_cast %9 : vector<4x64xf32> to vector<4x64x1xf32>
    %cst_7 = arith.constant 1.280000e+02 : f32
    %11 = vector.broadcast %cst_7 : f32 to vector<4x64x1xf32>
    %12 = arith.divf %10, %11 : vector<4x64x1xf32>
    %13 = vector.broadcast %12 : vector<4x64x1xf32> to vector<4x64x128xf32>
    %14 = arith.subf %8, %13 : vector<4x64x128xf32>
    %15 = arith.mulf %14, %14 : vector<4x64x128xf32>
    %cst_8 = arith.constant dense<0.000000e+00> : vector<4x64xf32>
    %16 = vector.multi_reduction <add>, %15, %cst_8 [2] : vector<4x64x128xf32> to vector<4x64xf32>
    %17 = vector.shape_cast %16 : vector<4x64xf32> to vector<4x64x1xf32>
    %cst_9 = arith.constant 1.280000e+02 : f32
    %18 = vector.broadcast %cst_9 : f32 to vector<4x64x1xf32>
    %19 = arith.divf %17, %18 : vector<4x64x1xf32>
    %cst_10 = arith.constant 9.99999974E-6 : f32
    %20 = vector.broadcast %cst_10 : f32 to vector<4x64x1xf32>
    %21 = arith.addf %19, %20 : vector<4x64x1xf32>
    %22 = math.rsqrt %21 : vector<4x64x1xf32>
    %c0_11 = arith.constant 0 : index
    %c0_12 = arith.constant 0 : index
    %23 = vector.load %arg4[%c0_11, %c0_12] : memref<1x128xf32, #tpu.memory_space<vmem>>, vector<1x128xf32>
    %24 = vector.shape_cast %23 : vector<1x128xf32> to vector<1x1x128xf32>
    %25 = vector.broadcast %22 : vector<4x64x1xf32> to vector<4x64x128xf32>
    %26 = vector.broadcast %24 : vector<1x1x128xf32> to vector<4x64x128xf32>
    %27 = arith.mulf %25, %26 : vector<4x64x128xf32>
    %c0_13 = arith.constant 0 : index
    %c0_14 = arith.constant 0 : index
    %28 = vector.load %arg5[%c0_13, %c0_14] : memref<1x128xf32, #tpu.memory_space<vmem>>, vector<1x128xf32>
    %29 = vector.broadcast %12 : vector<4x64x1xf32> to vector<4x64x128xf32>
    %30 = arith.mulf %29, %27 : vector<4x64x128xf32>
    %31 = vector.shape_cast %28 : vector<1x128xf32> to vector<1x1x128xf32>
    %32 = vector.broadcast %31 : vector<1x1x128xf32> to vector<4x64x128xf32>
    %33 = arith.subf %32, %30 : vector<4x64x128xf32>
    %34 = arith.mulf %8, %27 : vector<4x64x128xf32>
    %35 = arith.addf %34, %33 : vector<4x64x128xf32>
    %c0_15 = arith.constant 0 : index
    %c0_16 = arith.constant 0 : index
    %c0_17 = arith.constant 0 : index
    %36 = vector.load %arg6[%c0_15, %c0_16, %c0_17] : memref<4x64x128xf32, #tpu.memory_space<vmem>>, vector<4x64x128xf32>
    tpu.vector_store %arg6[%c0_15, %c0_16, %c0_17], %35 {strides = array<i32>} : memref<4x64x128xf32, #tpu.memory_space<vmem>>, vector<4x64x128xf32>,
    return
  }
  func.func @transform_0(%arg0: i32) -> (i32, i32, i32) {
    %c0_i32 = arith.constant 0 : i32
    %c0_i32_0 = arith.constant 0 : i32
    %c0_i32_1 = arith.constant 0 : i32
    return %arg0, %c0_i32, %c0_i32_0 : i32, i32, i32
  }
  func.func @transform_1(%arg0: i32) -> (i32, i32) {
    %c0_i32 = arith.constant 0 : i32
    %c0_i32_0 = arith.constant 0 : i32
    %c0_i32_1 = arith.constant 0 : i32
    return %c0_i32, %c0_i32_0 : i32, i32
  }
  func.func @transform_2(%arg0: i32) -> (i32, i32) {
    %c0_i32 = arith.constant 0 : i32
    %c0_i32_0 = arith.constant 0 : i32
    %c0_i32_1 = arith.constant 0 : i32
    return %c0_i32, %c0_i32_0 : i32, i32
  }
  func.func @transform_3(%arg0: i32) -> (i32, i32) {
    %c0_i32 = arith.constant 0 : i32
    %c0_i32_0 = arith.constant 0 : i32
    %c0_i32_1 = arith.constant 0 : i32
    return %c0_i32, %c0_i32_0 : i32, i32
  }
  func.func @transform_4(%arg0: i32) -> (i32, i32) {
    %c0_i32 = arith.constant 0 : i32
    %c0_i32_0 = arith.constant 0 : i32
    %c0_i32_1 = arith.constant 0 : i32
    return %c0_i32, %c0_i32_0 : i32, i32
  }
  func.func @transform_5(%arg0: i32) -> (i32, i32, i32) {
    %c0_i32 = arith.constant 0 : i32
    %c0_i32_0 = arith.constant 0 : i32
    %c0_i32_1 = arith.constant 0 : i32
    return %arg0, %c0_i32, %c0_i32_0 : i32, i32, i32
  }
}

</mosaic_0001>

<llo_original>
// kernel: tpu_custom_call.1
$region0: #{tpu_custom_call.1}
  #allocation0 [shape = 'u32[]', space=smem, size = 0x4, offset = 0x4, fixed_abs, tag = 'smem constant byte address 0x4 - core index']
  #allocation1 [shape = 'u32[144,128]{1,0:T(1,128)}', space=vmem, size = 0x12000, scoped, tag = 'internal scratch']
  %s0 = inlined_call_operand.vmem [shape: f32[8,64,32], index: 0, kind: input, shape index: {}]
  %s1 = inlined_call_operand.vmem [shape: f32[64,128], index: 1, kind: input, shape index: {}]
  %s2 = inlined_call_operand.vmem [shape: f32[32,128], index: 2, kind: input, shape index: {}]
  %s3 = inlined_call_operand.vmem [shape: f32[1,128], index: 3, kind: input, shape index: {}]
  %s4 = inlined_call_operand.vmem [shape: f32[1,128], index: 4, kind: input, shape index: {}]
  %s5 = inlined_call_operand.hbm [shape: f32[8,64,128], index: 5, kind: output, shape index: {}]
  %s6 = sld [smem:[#allocation0]]
  $region53: #{tpu_custom_call.1} parent=0
    _
  %s8 = ssub.s32 1, %s6
  %s9 = scalar_select 0, %s8, %s6
  $region1: #{tpu_custom_call.1} parent=0
    #allocation2 [shape = 'u8[262144]{0}', space=vmem, size = 0x40000, scoped, tag = 'output window, operand 0']
    #allocation3 [shape = 's32[2]{0}', space=sflag, size = 0x8, scoped, tag = 'scoped memory for tpu_custom_call.1']
    %10 = vsyncpa [#allocation3], 0
    %s11 = scalar_lea.sflag [#allocation3], 1
    %12 = vsyncpa %s11, 0
    loop: start=0, step=1, limit=4
    $region2: #{tpu_custom_call.1} parent=1 // loop_pre_header
      _
    $region3: #{tpu_custom_call.1} parent=1 // loop_header
      %s14 = sphi 0, %s18
      %p15 = scmp.ge.s32.totalorder %s14, 4
      %s24 = sphi 0, %s26
      %s27 = sphi 0, %s24
      %s28 = sphi 0, %s27
      %s44 = sphi 0, %s28
      %s48 = sphi 0, %s48
      %s50 = sphi 0, %s48
      %s51 = sphi 0, %s50
      %s65 = sphi 0, %s51
      %s69 = sphi 0, %s69
      %s71 = sphi 0, %s69
      %s72 = sphi 0, %s71
      %s86 = sphi 0, %s72
      %s90 = sphi 0, %s90
      %s92 = sphi 0, %s90
      %s93 = sphi 0, %s92
      %s107 = sphi 0, %s93
      %s111 = sphi 0, %s111
      %s113 = sphi 0, %s111
      %s114 = sphi 0, %s113
      %s128 = sphi 0, %s114
      %s134 = sphi 0, %s136
      %s137 = sphi 0, %s134
      %s138 = sphi 0, %s137
      %s154 = sphi 0, %s138
    $region4: #{tpu_custom_call.1} parent=1 // loop_header_branch
      %17 = sbr.rel (%p15) target = $region8
    $region5: #{tpu_custom_call.1} parent=1 // loop_body
      %s19 = ssub.s32 %s14, 1
      %s20 = ssub.s32 %s14, 2
      %s21 = sadd.s32 %s14, 1
      %s22 = ssub.s32 %s14, %s21
      %p23 = scmp.eq.s32.totalorder %s22, 0
      %s25 = sadd.s32 %s24, 1
      %s26 = scalar_select %p23, %s24, %s25
      %p29 = pneg %p23
      %p30 = scmp.eq.s32.totalorder %s14, 1
      %p31 = por %p29, %p30
      %p32 = scmp.ne.s32.totalorder %s24, %s27
      %p33 = scmp.eq.s32.totalorder %s14, 0
      %p34 = por %p32, %p33
      %p35 = scmp.ne.s32.totalorder %s24, %s27
      %p36 = scmp.eq.s32.totalorder %s19, 1
      %p37 = por %p35, %p36
      %p38 = scmp.ne.s32.totalorder %s27, %s28
      %p39 = scmp.eq.s32.totalorder %s19, 0
      %p40 = por %p38, %p39
      %p41 = scmp.ne.s32.totalorder %s27, %s28
      %p42 = scmp.eq.s32.totalorder %s20, 1
      %p43 = por %p41, %p42
      %p45 = scmp.ne.s32.totalorder %s28, %s44
      %p46 = scmp.eq.s32.totalorder %s20, 0
      %p47 = por %p45, %p46
      %s49 = sadd.s32 %s48, 1
      %p52 = scmp.eq.s32.totalorder %s14, 1
      %p53 = scmp.ne.s32.totalorder %s48, %s50
      %p54 = scmp.eq.s32.totalorder %s14, 0
      %p55 = por %p53, %p54
      %p56 = scmp.ne.s32.totalorder %s48, %s50
      %p57 = scmp.eq.s32.totalorder %s19, 1
      %p58 = por %p56, %p57
      %p59 = scmp.ne.s32.totalorder %s50, %s51
      %p60 = scmp.eq.s32.totalorder %s19, 0
      %p61 = por %p59, %p60
      %p62 = scmp.ne.s32.totalorder %s50, %s51
      %p63 = scmp.eq.s32.totalorder %s20, 1
      %p64 = por %p62, %p63
      %p66 = scmp.ne.s32.totalorder %s51, %s65
      %p67 = scmp.eq.s32.totalorder %s20, 0
      %p68 = por %p66, %p67
      %s70 = sadd.s32 %s69, 1
      %p73 = scmp.eq.s32.totalorder %s14, 1
      %p74 = scmp.ne.s32.totalorder %s69, %s71
      %p75 = scmp.eq.s32.totalorder %s14, 0
      %p76 = por %p74, %p75
      %p77 = scmp.ne.s32.totalorder %s69, %s71
      %p78 = scmp.eq.s32.totalorder %s19, 1
      %p79 = por %p77, %p78
      %p80 = scmp.ne.s32.totalorder %s71, %s72
      %p81 = scmp.eq.s32.totalorder %s19, 0
      %p82 = por %p80, %p81
      %p83 = scmp.ne.s32.totalorder %s71, %s72
      %p84 = scmp.eq.s32.totalorder %s20, 1
      %p85 = por %p83, %p84
      %p87 = scmp.ne.s32.totalorder %s72, %s86
      %p88 = scmp.eq.s32.totalorder %s20, 0
      %p89 = por %p87, %p88
      %s91 = sadd.s32 %s90, 1
      %p94 = scmp.eq.s32.totalorder %s14, 1
      %p95 = scmp.ne.s32.totalorder %s90, %s92
      %p96 = scmp.eq.s32.totalorder %s14, 0
      %p97 = por %p95, %p96
      %p98 = scmp.ne.s32.totalorder %s90, %s92
      %p99 = scmp.eq.s32.totalorder %s19, 1
      %p100 = por %p98, %p99
      %p101 = scmp.ne.s32.totalorder %s92, %s93
      %p102 = scmp.eq.s32.totalorder %s19, 0
      %p103 = por %p101, %p102
      %p104 = scmp.ne.s32.totalorder %s92, %s93
      %p105 = scmp.eq.s32.totalorder %s20, 1
      %p106 = por %p104, %p105
      %p108 = scmp.ne.s32.totalorder %s93, %s107
      %p109 = scmp.eq.s32.totalorder %s20, 0
      %p110 = por %p108, %p109
      %s112 = sadd.s32 %s111, 1
      %p115 = scmp.eq.s32.totalorder %s14, 1
      %p116 = scmp.ne.s32.totalorder %s111, %s113
      %p117 = scmp.eq.s32.totalorder %s14, 0
      %p118 = por %p116, %p117
      %p119 = scmp.ne.s32.totalorder %s111, %s113
      %p120 = scmp.eq.s32.totalorder %s19, 1
      %p121 = por %p119, %p120
      %p122 = scmp.ne.s32.totalorder %s113, %s114
      %p123 = scmp.eq.s32.totalorder %s19, 0
      %p124 = por %p122, %p123
      %p125 = scmp.ne.s32.totalorder %s113, %s114
      %p126 = scmp.eq.s32.totalorder %s20, 1
      %p127 = por %p125, %p126
      %p129 = scmp.ne.s32.totalorder %s114, %s128
      %p130 = scmp.eq.s32.totalorder %s20, 0
      %p131 = por %p129, %p130
      %s132 = ssub.s32 %s14, %s21
      %p133 = scmp.eq.s32.totalorder %s132, 0
      %s135 = sadd.s32 %s134, 1
      %s136 = scalar_select %p133, %s134, %s135
      %p139 = pneg %p133
      %p140 = scmp.eq.s32.totalorder %s14, 1
      %p141 = por %p139, %p140
      %p142 = scmp.ne.s32.totalorder %s134, %s137
      %p143 = scmp.eq.s32.totalorder %s14, 0
      %p144 = por %p142, %p143
      %p145 = scmp.ne.s32.totalorder %s134, %s137
      %p146 = scmp.eq.s32.totalorder %s19, 1
      %p147 = por %p145, %p146
      %p148 = scmp.ne.s32.totalorder %s137, %s138
      %p149 = scmp.eq.s32.totalorder %s19, 0
      %p150 = por %p148, %p149
      %p151 = scmp.ne.s32.totalorder %s137, %s138
      %p152 = scmp.eq.s32.totalorder %s20, 1
      %p153 = por %p151, %p152
      %p155 = scmp.ne.s32.totalorder %s138, %s154
      %p156 = scmp.eq.s32.totalorder %s20, 0
      %p157 = por %p155, %p156
      %p158 = scmp.le.s32.totalorder 1, %s14
      %p159 = scmp.lt.s32.totalorder %s14, 3
      %p160 = pnand %p158, %p159
      %p161 = pneg %p160
      // Predicated region
      $region9: #{tpu_custom_call.1} parent=5 // pred_check
        _
      $region10: #{tpu_custom_call.1} parent=5 // pred_check_branch
        %163 = sbr.rel (%p160) target = $region12
      $region11: #{tpu_custom_call.1} parent=5 // pred_region
        %s164 = ssub.s32 %s14, 1
        // Predicated region
        $region13: #{tpu_custom_call.1} parent=11 // pred_check
          %p165 = pneg %p61
        $region14: #{tpu_custom_call.1} parent=11 // pred_check_branch
          %167 = sbr.rel (%p165) target = $region16
        $region15: #{tpu_custom_call.1} parent=11 // pred_region
          _
        $region16: #{tpu_custom_call.1} parent=11 // pred_fallthru
          _
        // Predicated region
        $region17: #{tpu_custom_call.1} parent=11 // pred_check
          %p168 = pneg %p82
        $region18: #{tpu_custom_call.1} parent=11 // pred_check_branch
          %170 = sbr.rel (%p168) target = $region20
        $region19: #{tpu_custom_call.1} parent=11 // pred_region
          _
        $region20: #{tpu_custom_call.1} parent=11 // pred_fallthru
          _
        // Predicated region
        $region21: #{tpu_custom_call.1} parent=11 // pred_check
          %p171 = pneg %p103
        $region22: #{tpu_custom_call.1} parent=11 // pred_check_branch
          %173 = sbr.rel (%p171) target = $region24
        $region23: #{tpu_custom_call.1} parent=11 // pred_region
          _
        $region24: #{tpu_custom_call.1} parent=11 // pred_fallthru
          _
        // Predicated region
        $region25: #{tpu_custom_call.1} parent=11 // pred_check
          %p174 = pneg %p124
        $region26: #{tpu_custom_call.1} parent=11 // pred_check_branch
          %176 = sbr.rel (%p174) target = $region28
        $region27: #{tpu_custom_call.1} parent=11 // pred_region
          _
        $region28: #{tpu_custom_call.1} parent=11 // pred_fallthru
          _
      $region12: #{tpu_custom_call.1} parent=5 // pred_fallthru
        _
      %p177 = scmp.lt.s32.totalorder %s14, 2
      // Predicated region
      $region29: #{tpu_custom_call.1} parent=5 // pred_check
        %p178 = pneg %p177
      $region30: #{tpu_custom_call.1} parent=5 // pred_check_branch
        %180 = sbr.rel (%p178) target = $region32
      $region31: #{tpu_custom_call.1} parent=5 // pred_region
        // Predicated region
        $region33: #{tpu_custom_call.1} parent=31 // pred_check
          %p181 = pneg %p34
        $region34: #{tpu_custom_call.1} parent=31 // pred_check_branch
          %183 = sbr.rel (%p181) target = $region36
        $region35: #{tpu_custom_call.1} parent=31 // pred_region
          %s184 = smul.u32 4, %s14
          %p185 = scmp.lt.s32.totalorder %s184, 7
          %s186 = scalar_select %p185, %s184, 7
          %s187 = smul.addr %s186, 8
          %s188 = smul.addr %s187, 8
          %s189 = scalar_lea.vmem %s0, %s188
          %s190 = smul.u32 4, %s14
        $region36: #{tpu_custom_call.1} parent=31 // pred_fallthru
          _
      $region32: #{tpu_custom_call.1} parent=5 // pred_fallthru
        _
      %p191 = scmp.le.s32.totalorder 1, %s14
      %p192 = scmp.lt.s32.totalorder %s14, 3
      %p193 = pnand %p191, %p192
      %p194 = pneg %p193
      // Predicated region
      $region37: #{tpu_custom_call.1} parent=5 // pred_check
        _
      $region38: #{tpu_custom_call.1} parent=5 // pred_check_branch
        %196 = sbr.rel (%p193) target = $region40
      $region39: #{tpu_custom_call.1} parent=5 // pred_region
        %s197 = ssub.s32 %s14, 1
        %s198 = smul.u32 4, %s19
        %p199 = scmp.lt.s32.totalorder %s198, 7
        %s200 = scalar_select %p199, %s198, 7
        %s201 = smul.addr %s200, 8
        %s202 = smul.addr %s201, 8
        %s203 = scalar_lea.vmem %s0, %s202
        %p204 = pneg %p40
        %p205 = pneg %p37
        %p206 = pneg %p61
        %p207 = pneg %p58
        %p208 = pneg %p82
        %p209 = pneg %p79
        %p210 = pneg %p103
        %p211 = pneg %p100
        %p212 = pneg %p124
        %p213 = pneg %p121
        %p214 = pneg %p150
        %p215 = pneg %p147
        %s216 = sand.u32 %s137, 1
        %s217 = scalar_lea.sflag [#allocation3], %s216
        %s218 = sand.u32 %s137, 1
        %s219 = smul.addr %s218, 256
        %s220 = scalar_lea.vmem [#allocation2], %s219
        %s221 = smul.u32 4, %s19
        %p222 = scmp.lt.s32.totalorder %s221, 7
        %s223 = scalar_select %p222, %s221, 7
        %s224 = smul.addr %s223, 8
        %s225 = smul.addr %s224, 8
        %s226 = scalar_lea.vmem %s0, %s225
        %s227 = smul.u32 4, %s19
        %s228 = smul.u32 4, %s19
        %v229 = vld [vmem:[%s226] sm:$0xff]
        %v230 = vld [vmem:[%s226 + $0x8] sm:$0xff]
        %v231 = vld [vmem:[%s226 + $0x10] sm:$0xff]
        %v232 = vld [vmem:[%s226 + $0x18] sm:$0xff]
        %v233 = vld [vmem:[%s226 + $0x20] sm:$0xff]
        %v234 = vld [vmem:[%s226 + $0x28] sm:$0xff]
        %v235 = vld [vmem:[%s226 + $0x30] sm:$0xff]
        %v236 = vld [vmem:[%s226 + $0x38] sm:$0xff]
        %v237 = vld [vmem:[%s226 + $0x40] sm:$0xff]
        %v238 = vld [vmem:[%s226 + $0x48] sm:$0xff]
        %v239 = vld [vmem:[%s226 + $0x50] sm:$0xff]
        %v240 = vld [vmem:[%s226 + $0x58] sm:$0xff]
        %v241 = vld [vmem:[%s226 + $0x60] sm:$0xff]
        %v242 = vld [vmem:[%s226 + $0x68] sm:$0xff]
        %v243 = vld [vmem:[%s226 + $0x70] sm:$0xff]
        %v244 = vld [vmem:[%s226 + $0x78] sm:$0xff]
        %v245 = vld [vmem:[%s226 + $0x80] sm:$0xff]
        %v246 = vld [vmem:[%s226 + $0x88] sm:$0xff]
        %v247 = vld [vmem:[%s226 + $0x90] sm:$0xff]
        %v248 = vld [vmem:[%s226 + $0x98] sm:$0xff]
        %v249 = vld [vmem:[%s226 + $0xa0] sm:$0xff]
        %v250 = vld [vmem:[%s226 + $0xa8] sm:$0xff]
        %v251 = vld [vmem:[%s226 + $0xb0] sm:$0xff]
        %v252 = vld [vmem:[%s226 + $0xb8] sm:$0xff]
        %v253 = vld [vmem:[%s226 + $0xc0] sm:$0xff]
        %v254 = vld [vmem:[%s226 + $0xc8] sm:$0xff]
        %v255 = vld [vmem:[%s226 + $0xd0] sm:$0xff]
        %v256 = vld [vmem:[%s226 + $0xd8] sm:$0xff]
        %v257 = vld [vmem:[%s226 + $0xe0] sm:$0xff]
        %v258 = vld [vmem:[%s226 + $0xe8] sm:$0xff]
        %v259 = vld [vmem:[%s226 + $0xf0] sm:$0xff]
        %v260 = vld [vmem:[%s226 + $0xf8] sm:$0xff]
        %v261 = vld [vmem:[%s2] sm:$0xff]
        %v262 = vld [vmem:[%s2 + $0x8] sm:$0xff]
        %v263 = vld [vmem:[%s2 + $0x10] sm:$0xff]
        %v264 = vld [vmem:[%s2 + $0x18] sm:$0xff]
        %vm265 = vcmask 261120
        %v267 = vsel %vm265, %v229, 0
        %v270 = vsel %vm265, %v230, 0
        %v273 = vsel %vm265, %v231, 0
        %v276 = vsel %vm265, %v232, 0
        %v279 = vsel %vm265, %v233, 0
        %v282 = vsel %vm265, %v234, 0
        %v285 = vsel %vm265, %v235, 0
        %v288 = vsel %vm265, %v236, 0
        %v291 = vsel %vm265, %v237, 0
        %v294 = vsel %vm265, %v238, 0
        %v297 = vsel %vm265, %v239, 0
        %v300 = vsel %vm265, %v240, 0
        %v303 = vsel %vm265, %v241, 0
        %v306 = vsel %vm265, %v242, 0
        %v309 = vsel %vm265, %v243, 0
        %v312 = vsel %vm265, %v244, 0
        %v315 = vsel %vm265, %v245, 0
        %v318 = vsel %vm265, %v246, 0
        %v321 = vsel %vm265, %v247, 0
        %v324 = vsel %vm265, %v248, 0
        %v327 = vsel %vm265, %v249, 0
        %v330 = vsel %vm265, %v250, 0
        %v333 = vsel %vm265, %v251, 0
        %v336 = vsel %vm265, %v252, 0
        %v339 = vsel %vm265, %v253, 0
        %v342 = vsel %vm265, %v254, 0
        %v345 = vsel %vm265, %v255, 0
        %v348 = vsel %vm265, %v256, 0
        %v351 = vsel %vm265, %v257, 0
        %v354 = vsel %vm265, %v258, 0
        %v357 = vsel %vm265, %v259, 0
        %v360 = vsel %vm265, %v260, 0
        %362 = vmatprep.subr.mxu0 0.0
        %363 = vmatpush1.msra.mxu0 0.0
        %364 = vmatprep.subr.mxu0 0.0
        %365 = vmatpush1.msra.mxu0 0.0
        %366 = vmatprep.subr.mxu0 0.0
        %367 = vmatpush1.msra.mxu0 0.0
        %368 = vmatprep.subr.mxu0 0.0
        %369 = vmatpush1.msra.mxu0 0.0
        %370 = vmatprep.subr.mxu0 0.0
        %371 = vmatpush1.msra.mxu0 0.0
        %372 = vmatprep.subr.mxu0 0.0
        %373 = vmatpush1.msra.mxu0 0.0
        %374 = vmatprep.subr.mxu0 0.0
        %375 = vmatpush1.msra.mxu0 0.0
        %376 = vmatprep.subr.mxu0 0.0
        %377 = vmatpush1.msra.mxu0 0.0
        %378 = vmatprep.subr.mxu0 0.0
        %379 = vmatpush1.msra.mxu0 0.0
        %380 = vmatprep.subr.mxu0 0.0
        %381 = vmatpush1.msra.mxu0 0.0
        %382 = vmatprep.subr.mxu0 0.0
        %383 = vmatpush1.msra.mxu0 0.0
        %384 = vmatprep.subr.mxu0 0.0
        %385 = vmatpush1.msra.mxu0 0.0
        %386 = vmatprep.subr.mxu0 0.0
        %v387 = vand.u32 %v264, 4294901760
        %388 = vmatpush1.msra.mxu0 %v387
        %389 = vmatprep.subr.mxu0 0.0
        %v390 = vand.u32 %v263, 4294901760
        %391 = vmatpush1.msra.mxu0 %v390
        %392 = vmatprep.subr.mxu0 0.0
        %v393 = vand.u32 %v262, 4294901760
        %394 = vmatpush1.msra.mxu0 %v393
        %395 = vmatprep.subr.mxu0 0.0
        %v396 = vand.u32 %v261, 4294901760
        %397 = vmatpush1.msra.mxu0 %v396
        %398 = vmatprep.subr.mxu0 0.0
        %399 = vmatpush2.msra.mxu0 0.0
        %400 = vmatprep.subr.mxu0 0.0
        %401 = vmatpush2.msra.mxu0 0.0
        %402 = vmatprep.subr.mxu0 0.0
        %403 = vmatpush2.msra.mxu0 0.0
        %404 = vmatprep.subr.mxu0 0.0
        %405 = vmatpush2.msra.mxu0 0.0
        %406 = vmatprep.subr.mxu0 0.0
        %407 = vmatpush2.msra.mxu0 0.0
        %408 = vmatprep.subr.mxu0 0.0
        %409 = vmatpush2.msra.mxu0 0.0
        %410 = vmatprep.subr.mxu0 0.0
        %411 = vmatpush2.msra.mxu0 0.0
        %412 = vmatprep.subr.mxu0 0.0
        %413 = vmatpush2.msra.mxu0 0.0
        %414 = vmatprep.subr.mxu0 0.0
        %415 = vmatpush2.msra.mxu0 0.0
        %416 = vmatprep.subr.mxu0 0.0
        %417 = vmatpush2.msra.mxu0 0.0
        %418 = vmatprep.subr.mxu0 0.0
        %419 = vmatpush2.msra.mxu0 0.0
        %420 = vmatprep.subr.mxu0 0.0
        %421 = vmatpush2.msra.mxu0 0.0
        %422 = vmatprep.subr.mxu0 0.0
        %423 = vmatpush2.msra.mxu0 0.0
        %424 = vmatprep.subr.mxu0 0.0
        %425 = vmatpush2.msra.mxu0 0.0
        %426 = vmatprep.subr.mxu0 0.0
        %427 = vmatpush2.msra.mxu0 0.0
        %428 = vmatprep.subr.mxu0 0.0
        %429 = vmatpush2.msra.mxu0 0.0
        %430 = vmatprep.mubr.f32.mxu0 0.0
        %v431 = vand.u32 %v267, 4294901760
        %v432 = vsub.f32 %v267, %v431
        %v433 = vand.u32 %v432, 4294901760
        %v434 = vsub.f32 %v432, %v433
        %v435 = vand.u32 %v434, 4294901760
        %436 = vmatmul.mubr.f32.gmra.mxu0 %v435
        %v437 = vpop.f32.mrf.mxu0
        %v438 = vadd.f32 0.0, %v437
        %v439 = vpop.f32.mrf.mxu0
        %440 = vmatprep.mubr.f32.mxu0 0.0
        %v441 = vand.u32 %v270, 4294901760
        %v442 = vsub.f32 %v270, %v441
        %v443 = vand.u32 %v442, 4294901760
        %v444 = vsub.f32 %v442, %v443
        %v445 = vand.u32 %v444, 4294901760
        %446 = vmatmul.mubr.f32.gmra.mxu0 %v445
        %v447 = vpop.f32.mrf.mxu0
        %v448 = vadd.f32 0.0, %v447
        %v449 = vpop.f32.mrf.mxu0
        %450 = vmatprep.mubr.f32.mxu0 0.0
        %v451 = vand.u32 %v273, 4294901760
        %v452 = vsub.f32 %v273, %v451
        %v453 = vand.u32 %v452, 4294901760
        %v454 = vsub.f32 %v452, %v453
        %v455 = vand.u32 %v454, 4294901760
        %456 = vmatmul.mubr.f32.gmra.mxu0 %v455
        %v457 = vpop.f32.mrf.mxu0
        %v458 = vadd.f32 0.0, %v457
        %v459 = vpop.f32.mrf.mxu0
        %460 = vmatprep.mubr.f32.mxu0 0.0
        %v461 = vand.u32 %v276, 4294901760
        %v462 = vsub.f32 %v276, %v461
        %v463 = vand.u32 %v462, 4294901760
        %v464 = vsub.f32 %v462, %v463
        %v465 = vand.u32 %v464, 4294901760
        %466 = vmatmul.mubr.f32.gmra.mxu0 %v465
        %v467 = vpop.f32.mrf.mxu0
        %v468 = vadd.f32 0.0, %v467
        %v469 = vpop.f32.mrf.mxu0
        %470 = vmatprep.mubr.f32.mxu0 0.0
        %v471 = vand.u32 %v279, 4294901760
        %v472 = vsub.f32 %v279, %v471
        %v473 = vand.u32 %v472, 4294901760
        %v474 = vsub.f32 %v472, %v473
        %v475 = vand.u32 %v474, 4294901760
        %476 = vmatmul.mubr.f32.gmra.mxu0 %v475
        %v477 = vpop.f32.mrf.mxu0
        %v478 = vadd.f32 0.0, %v477
        %v479 = vpop.f32.mrf.mxu0
        %480 = vmatprep.mubr.f32.mxu0 0.0
        %v481 = vand.u32 %v282, 4294901760
        %v482 = vsub.f32 %v282, %v481
        %v483 = vand.u32 %v482, 4294901760
        %v484 = vsub.f32 %v482, %v483
        %v485 = vand.u32 %v484, 4294901760
        %486 = vmatmul.mubr.f32.gmra.mxu0 %v485
        %v487 = vpop.f32.mrf.mxu0
        %v488 = vadd.f32 0.0, %v487
        %v489 = vpop.f32.mrf.mxu0
        %490 = vmatprep.mubr.f32.mxu0 0.0
        %v491 = vand.u32 %v285, 4294901760
        %v492 = vsub.f32 %v285, %v491
        %v493 = vand.u32 %v492, 4294901760
        %v494 = vsub.f32 %v492, %v493
        %v495 = vand.u32 %v494, 4294901760
        %496 = vmatmul.mubr.f32.gmra.mxu0 %v495
        %v497 = vpop.f32.mrf.mxu0
        %v498 = vadd.f32 0.0, %v497
        %v499 = vpop.f32.mrf.mxu0
        %500 = vmatprep.mubr.f32.mxu0 0.0
        %v501 = vand.u32 %v288, 4294901760
        %v502 = vsub.f32 %v288, %v501
        %v503 = vand.u32 %v502, 4294901760
        %v504 = vsub.f32 %v502, %v503
        %v505 = vand.u32 %v504, 4294901760
        %506 = vmatmul.mubr.f32.gmra.mxu0 %v505
        %v507 = vpop.f32.mrf.mxu0
        %v508 = vadd.f32 0.0, %v507
        %v509 = vpop.f32.mrf.mxu0
        %510 = vmatprep.mubr.f32.mxu0 0.0
        %v511 = vand.u32 %v291, 4294901760
        %v512 = vsub.f32 %v291, %v511
        %v513 = vand.u32 %v512, 4294901760
        %v514 = vsub.f32 %v512, %v513
        %v515 = vand.u32 %v514, 4294901760
        %516 = vmatmul.mubr.f32.gmra.mxu0 %v515
        %v517 = vpop.f32.mrf.mxu0
        %v518 = vadd.f32 0.0, %v517
        %v519 = vpop.f32.mrf.mxu0
        %520 = vmatprep.mubr.f32.mxu0 0.0
        %v521 = vand.u32 %v294, 4294901760
        %v522 = vsub.f32 %v294, %v521
        %v523 = vand.u32 %v522, 4294901760
        %v524 = vsub.f32 %v522, %v523
        %v525 = vand.u32 %v524, 4294901760
        %526 = vmatmul.mubr.f32.gmra.mxu0 %v525
        %v527 = vpop.f32.mrf.mxu0
        %v528 = vadd.f32 0.0, %v527
        %v529 = vpop.f32.mrf.mxu0
        %530 = vmatprep.mubr.f32.mxu0 0.0
        %v531 = vand.u32 %v297, 4294901760
        %v532 = vsub.f32 %v297, %v531
        %v533 = vand.u32 %v532, 4294901760
        %v534 = vsub.f32 %v532, %v533
        %v535 = vand.u32 %v534, 4294901760
        %536 = vmatmul.mubr.f32.gmra.mxu0 %v535
        %v537 = vpop.f32.mrf.mxu0
        %v538 = vadd.f32 0.0, %v537
        %v539 = vpop.f32.mrf.mxu0
        %540 = vmatprep.mubr.f32.mxu0 0.0
        %v541 = vand.u32 %v300, 4294901760
        %v542 = vsub.f32 %v300, %v541
        %v543 = vand.u32 %v542, 4294901760
        %v544 = vsub.f32 %v542, %v543
        %v545 = vand.u32 %v544, 4294901760
        %546 = vmatmul.mubr.f32.gmra.mxu0 %v545
        %v547 = vpop.f32.mrf.mxu0
        %v548 = vadd.f32 0.0, %v547
        %v549 = vpop.f32.mrf.mxu0
        %550 = vmatprep.mubr.f32.mxu0 0.0
        %v551 = vand.u32 %v303, 4294901760
        %v552 = vsub.f32 %v303, %v551
        %v553 = vand.u32 %v552, 4294901760
        %v554 = vsub.f32 %v552, %v553
        %v555 = vand.u32 %v554, 4294901760
        %556 = vmatmul.mubr.f32.gmra.mxu0 %v555
        %v557 = vpop.f32.mrf.mxu0
        %v558 = vadd.f32 0.0, %v557
        %v559 = vpop.f32.mrf.mxu0
        %560 = vmatprep.mubr.f32.mxu0 0.0
        %v561 = vand.u32 %v306, 4294901760
        %v562 = vsub.f32 %v306, %v561
        %v563 = vand.u32 %v562, 4294901760
        %v564 = vsub.f32 %v562, %v563
        %v565 = vand.u32 %v564, 4294901760
        %566 = vmatmul.mubr.f32.gmra.mxu0 %v565
        %v567 = vpop.f32.mrf.mxu0
        %v568 = vadd.f32 0.0, %v567
        %v569 = vpop.f32.mrf.mxu0
        %570 = vmatprep.mubr.f32.mxu0 0.0
        %v571 = vand.u32 %v309, 4294901760
        %v572 = vsub.f32 %v309, %v571
        %v573 = vand.u32 %v572, 4294901760
        %v574 = vsub.f32 %v572, %v573
        %v575 = vand.u32 %v574, 4294901760
        %576 = vmatmul.mubr.f32.gmra.mxu0 %v575
        %v577 = vpop.f32.mrf.mxu0
        %v578 = vadd.f32 0.0, %v577
        %v579 = vpop.f32.mrf.mxu0
        %580 = vmatprep.mubr.f32.mxu0 0.0
        %v581 = vand.u32 %v312, 4294901760
        %v582 = vsub.f32 %v312, %v581
        %v583 = vand.u32 %v582, 4294901760
        %v584 = vsub.f32 %v582, %v583
        %v585 = vand.u32 %v584, 4294901760
        %586 = vmatmul.mubr.f32.gmra.mxu0 %v585
        %v587 = vpop.f32.mrf.mxu0
        %v588 = vadd.f32 0.0, %v587
        %v589 = vpop.f32.mrf.mxu0
        %590 = vmatprep.mubr.f32.mxu0 0.0
        %v591 = vand.u32 %v315, 4294901760
        %v592 = vsub.f32 %v315, %v591
        %v593 = vand.u32 %v592, 4294901760
        %v594 = vsub.f32 %v592, %v593
        %v595 = vand.u32 %v594, 4294901760
        %596 = vmatmul.mubr.f32.gmra.mxu0 %v595
        %v597 = vpop.f32.mrf.mxu0
        %v598 = vadd.f32 0.0, %v597
        %v599 = vpop.f32.mrf.mxu0
        %600 = vmatprep.mubr.f32.mxu0 0.0
        %v601 = vand.u32 %v318, 4294901760
        %v602 = vsub.f32 %v318, %v601
        %v603 = vand.u32 %v602, 4294901760
        %v604 = vsub.f32 %v602, %v603
        %v605 = vand.u32 %v604, 4294901760
        %606 = vmatmul.mubr.f32.gmra.mxu0 %v605
        %v607 = vpop.f32.mrf.mxu0
        %v608 = vadd.f32 0.0, %v607
        %v609 = vpop.f32.mrf.mxu0
        %610 = vmatprep.mubr.f32.mxu0 0.0
        %v611 = vand.u32 %v321, 4294901760
        %v612 = vsub.f32 %v321, %v611
        %v613 = vand.u32 %v612, 4294901760
        %v614 = vsub.f32 %v612, %v613
        %v615 = vand.u32 %v614, 4294901760
        %616 = vmatmul.mubr.f32.gmra.mxu0 %v615
        %v617 = vpop.f32.mrf.mxu0
        %v618 = vadd.f32 0.0, %v617
        %v619 = vpop.f32.mrf.mxu0
        %620 = vmatprep.mubr.f32.mxu0 0.0
        %v621 = vand.u32 %v324, 4294901760
        %v622 = vsub.f32 %v324, %v621
        %v623 = vand.u32 %v622, 4294901760
        %v624 = vsub.f32 %v622, %v623
        %v625 = vand.u32 %v624, 4294901760
        %626 = vmatmul.mubr.f32.gmra.mxu0 %v625
        %v627 = vpop.f32.mrf.mxu0
        %v628 = vadd.f32 0.0, %v627
        %v629 = vpop.f32.mrf.mxu0
        %630 = vmatprep.mubr.f32.mxu0 0.0
        %v631 = vand.u32 %v327, 4294901760
        %v632 = vsub.f32 %v327, %v631
        %v633 = vand.u32 %v632, 4294901760
        %v634 = vsub.f32 %v632, %v633
        %v635 = vand.u32 %v634, 4294901760
        %636 = vmatmul.mubr.f32.gmra.mxu0 %v635
        %v637 = vpop.f32.mrf.mxu0
        %v638 = vadd.f32 0.0, %v637
        %v639 = vpop.f32.mrf.mxu0
        %640 = vmatprep.mubr.f32.mxu0 0.0
        %v641 = vand.u32 %v330, 4294901760
        %v642 = vsub.f32 %v330, %v641
        %v643 = vand.u32 %v642, 4294901760
        %v644 = vsub.f32 %v642, %v643
        %v645 = vand.u32 %v644, 4294901760
        %646 = vmatmul.mubr.f32.gmra.mxu0 %v645
        %v647 = vpop.f32.mrf.mxu0
        %v648 = vadd.f32 0.0, %v647
        %v649 = vpop.f32.mrf.mxu0
        %650 = vmatprep.mubr.f32.mxu0 0.0
        %v651 = vand.u32 %v333, 4294901760
        %v652 = vsub.f32 %v333, %v651
        %v653 = vand.u32 %v652, 4294901760
        %v654 = vsub.f32 %v652, %v653
        %v655 = vand.u32 %v654, 4294901760
        %656 = vmatmul.mubr.f32.gmra.mxu0 %v655
        %v657 = vpop.f32.mrf.mxu0
        %v658 = vadd.f32 0.0, %v657
        %v659 = vpop.f32.mrf.mxu0
        %660 = vmatprep.mubr.f32.mxu0 0.0
        %v661 = vand.u32 %v336, 4294901760
        %v662 = vsub.f32 %v336, %v661
        %v663 = vand.u32 %v662, 4294901760
        %v664 = vsub.f32 %v662, %v663
        %v665 = vand.u32 %v664, 4294901760
        %666 = vmatmul.mubr.f32.gmra.mxu0 %v665
        %v667 = vpop.f32.mrf.mxu0
        %v668 = vadd.f32 0.0, %v667
        %v669 = vpop.f32.mrf.mxu0
        %670 = vmatprep.mubr.f32.mxu0 0.0
        %v671 = vand.u32 %v339, 4294901760
        %v672 = vsub.f32 %v339, %v671
        %v673 = vand.u32 %v672, 4294901760
        %v674 = vsub.f32 %v672, %v673
        %v675 = vand.u32 %v674, 4294901760
        %676 = vmatmul.mubr.f32.gmra.mxu0 %v675
        %v677 = vpop.f32.mrf.mxu0
        %v678 = vadd.f32 0.0, %v677
        %v679 = vpop.f32.mrf.mxu0
        %680 = vmatprep.mubr.f32.mxu0 0.0
        %v681 = vand.u32 %v342, 4294901760
        %v682 = vsub.f32 %v342, %v681
        %v683 = vand.u32 %v682, 4294901760
        %v684 = vsub.f32 %v682, %v683
        %v685 = vand.u32 %v684, 4294901760
        %686 = vmatmul.mubr.f32.gmra.mxu0 %v685
        %v687 = vpop.f32.mrf.mxu0
        %v688 = vadd.f32 0.0, %v687
        %v689 = vpop.f32.mrf.mxu0
        %690 = vmatprep.mubr.f32.mxu0 0.0
        %v691 = vand.u32 %v345, 4294901760
        %v692 = vsub.f32 %v345, %v691
        %v693 = vand.u32 %v692, 4294901760
        %v694 = vsub.f32 %v692, %v693
        %v695 = vand.u32 %v694, 4294901760
        %696 = vmatmul.mubr.f32.gmra.mxu0 %v695
        %v697 = vpop.f32.mrf.mxu0
        %v698 = vadd.f32 0.0, %v697
        %v699 = vpop.f32.mrf.mxu0
        %700 = vmatprep.mubr.f32.mxu0 0.0
        %v701 = vand.u32 %v348, 4294901760
        %v702 = vsub.f32 %v348, %v701
        %v703 = vand.u32 %v702, 4294901760
        %v704 = vsub.f32 %v702, %v703
        %v705 = vand.u32 %v704, 4294901760
        %706 = vmatmul.mubr.f32.gmra.mxu0 %v705
        %v707 = vpop.f32.mrf.mxu0
        %v708 = vadd.f32 0.0, %v707
        %v709 = vpop.f32.mrf.mxu0
        %710 = vmatprep.mubr.f32.mxu0 0.0
        %v711 = vand.u32 %v351, 4294901760
        %v712 = vsub.f32 %v351, %v711
        %v713 = vand.u32 %v712, 4294901760
        %v714 = vsub.f32 %v712, %v713
        %v715 = vand.u32 %v714, 4294901760
        %716 = vmatmul.mubr.f32.gmra.mxu0 %v715
        %v717 = vpop.f32.mrf.mxu0
        %v718 = vadd.f32 0.0, %v717
        %v719 = vpop.f32.mrf.mxu0
        %720 = vmatprep.mubr.f32.mxu0 0.0
        %v721 = vand.u32 %v354, 4294901760
        %v722 = vsub.f32 %v354, %v721
        %v723 = vand.u32 %v722, 4294901760
        %v724 = vsub.f32 %v722, %v723
        %v725 = vand.u32 %v724, 4294901760
        %726 = vmatmul.mubr.f32.gmra.mxu0 %v725
        %v727 = vpop.f32.mrf.mxu0
        %v728 = vadd.f32 0.0, %v727
        %v729 = vpop.f32.mrf.mxu0
        %730 = vmatprep.mubr.f32.mxu0 0.0
        %v731 = vand.u32 %v357, 4294901760
        %v732 = vsub.f32 %v357, %v731
        %v733 = vand.u32 %v732, 4294901760
        %v734 = vsub.f32 %v732, %v733
        %v735 = vand.u32 %v734, 4294901760
        %736 = vmatmul.mubr.f32.gmra.mxu0 %v735
        %v737 = vpop.f32.mrf.mxu0
        %v738 = vadd.f32 0.0, %v737
        %v739 = vpop.f32.mrf.mxu0
        %740 = vmatprep.mubr.f32.mxu0 0.0
        %v741 = vand.u32 %v360, 4294901760
        %v742 = vsub.f32 %v360, %v741
        %v743 = vand.u32 %v742, 4294901760
        %v744 = vsub.f32 %v742, %v743
        %v745 = vand.u32 %v744, 4294901760
        %746 = vmatmul.mubr.f32.gmra.mxu0 %v745
        %v747 = vpop.f32.mrf.mxu0
        %v748 = vadd.f32 0.0, %v747
        %v749 = vpop.f32.mrf.mxu0
        %750 = vdwg.mxu0
        %751 = vmatprep.subr.mxu0 0.0
        %752 = vmatpush1.msra.mxu0 0.0
        %753 = vmatprep.subr.mxu0 0.0
        %754 = vmatpush1.msra.mxu0 0.0
        %755 = vmatprep.subr.mxu0 0.0
        %756 = vmatpush1.msra.mxu0 0.0
        %757 = vmatprep.subr.mxu0 0.0
        %758 = vmatpush1.msra.mxu0 0.0
        %759 = vmatprep.subr.mxu0 0.0
        %760 = vmatpush1.msra.mxu0 0.0
        %761 = vmatprep.subr.mxu0 0.0
        %762 = vmatpush1.msra.mxu0 0.0
        %763 = vmatprep.subr.mxu0 0.0
        %764 = vmatpush1.msra.mxu0 0.0
        %765 = vmatprep.subr.mxu0 0.0
        %766 = vmatpush1.msra.mxu0 0.0
        %767 = vmatprep.subr.mxu0 0.0
        %768 = vmatpush1.msra.mxu0 0.0
        %769 = vmatprep.subr.mxu0 0.0
        %770 = vmatpush1.msra.mxu0 0.0
        %771 = vmatprep.subr.mxu0 0.0
        %772 = vmatpush1.msra.mxu0 0.0
        %773 = vmatprep.subr.mxu0 0.0
        %774 = vmatpush1.msra.mxu0 0.0
        %775 = vmatprep.subr.mxu0 0.0
        %v776 = vand.u32 %v264, 4294901760
        %v777 = vsub.f32 %v264, %v776
        %v778 = vand.u32 %v777, 4294901760
        %v779 = vsub.f32 %v777, %v778
        %v780 = vand.u32 %v779, 4294901760
        %781 = vmatpush1.msra.mxu0 %v780
        %782 = vmatprep.subr.mxu0 0.0
        %v783 = vand.u32 %v263, 4294901760
        %v784 = vsub.f32 %v263, %v783
        %v785 = vand.u32 %v784, 4294901760
        %v786 = vsub.f32 %v784, %v785
        %v787 = vand.u32 %v786, 4294901760
        %788 = vmatpush1.msra.mxu0 %v787
        %789 = vmatprep.subr.mxu0 0.0
        %v790 = vand.u32 %v262, 4294901760
        %v791 = vsub.f32 %v262, %v790
        %v792 = vand.u32 %v791, 4294901760
        %v793 = vsub.f32 %v791, %v792
        %v794 = vand.u32 %v793, 4294901760
        %795 = vmatpush1.msra.mxu0 %v794
        %796 = vmatprep.subr.mxu0 0.0
        %v797 = vand.u32 %v261, 4294901760
        %v798 = vsub.f32 %v261, %v797
        %v799 = vand.u32 %v798, 4294901760
        %v800 = vsub.f32 %v798, %v799
        %v801 = vand.u32 %v800, 4294901760
        %802 = vmatpush1.msra.mxu0 %v801
        %803 = vmatprep.subr.mxu0 0.0
        %804 = vmatpush2.msra.mxu0 0.0
        %805 = vmatprep.subr.mxu0 0.0
        %806 = vmatpush2.msra.mxu0 0.0
        %807 = vmatprep.subr.mxu0 0.0
        %808 = vmatpush2.msra.mxu0 0.0
        %809 = vmatprep.subr.mxu0 0.0
        %810 = vmatpush2.msra.mxu0 0.0
        %811 = vmatprep.subr.mxu0 0.0
        %812 = vmatpush2.msra.mxu0 0.0
        %813 = vmatprep.subr.mxu0 0.0
        %814 = vmatpush2.msra.mxu0 0.0
        %815 = vmatprep.subr.mxu0 0.0
        %816 = vmatpush2.msra.mxu0 0.0
        %817 = vmatprep.subr.mxu0 0.0
        %818 = vmatpush2.msra.mxu0 0.0
        %819 = vmatprep.subr.mxu0 0.0
        %820 = vmatpush2.msra.mxu0 0.0
        %821 = vmatprep.subr.mxu0 0.0
        %822 = vmatpush2.msra.mxu0 0.0
        %823 = vmatprep.subr.mxu0 0.0
        %824 = vmatpush2.msra.mxu0 0.0
        %825 = vmatprep.subr.mxu0 0.0
        %826 = vmatpush2.msra.mxu0 0.0
        %827 = vmatprep.subr.mxu0 0.0
        %828 = vmatpush2.msra.mxu0 0.0
        %829 = vmatprep.subr.mxu0 0.0
        %830 = vmatpush2.msra.mxu0 0.0
        %831 = vmatprep.subr.mxu0 0.0
        %832 = vmatpush2.msra.mxu0 0.0
        %833 = vmatprep.subr.mxu0 0.0
        %834 = vmatpush2.msra.mxu0 0.0
        %835 = vmatprep.mubr.f32.mxu0 0.0
        %v836 = vand.u32 %v267, 4294901760
        %837 = vmatmul.mubr.f32.gmra.mxu0 %v836
        %v838 = vpop.f32.mrf.mxu0
        %v839 = vadd.f32 %v438, %v838
        %v840 = vpop.f32.mrf.mxu0
        %841 = vmatprep.mubr.f32.mxu0 0.0
        %v842 = vand.u32 %v270, 4294901760
        %843 = vmatmul.mubr.f32.gmra.mxu0 %v842
        %v844 = vpop.f32.mrf.mxu0
        %v845 = vadd.f32 %v448, %v844
        %v846 = vpop.f32.mrf.mxu0
        %847 = vmatprep.mubr.f32.mxu0 0.0
        %v848 = vand.u32 %v273, 4294901760
        %849 = vmatmul.mubr.f32.gmra.mxu0 %v848
        %v850 = vpop.f32.mrf.mxu0
        %v851 = vadd.f32 %v458, %v850
        %v852 = vpop.f32.mrf.mxu0
        %853 = vmatprep.mubr.f32.mxu0 0.0
        %v854 = vand.u32 %v276, 4294901760
        %855 = vmatmul.mubr.f32.gmra.mxu0 %v854
        %v856 = vpop.f32.mrf.mxu0
        %v857 = vadd.f32 %v468, %v856
        %v858 = vpop.f32.mrf.mxu0
        %859 = vmatprep.mubr.f32.mxu0 0.0
        %v860 = vand.u32 %v279, 4294901760
        %861 = vmatmul.mubr.f32.gmra.mxu0 %v860
        %v862 = vpop.f32.mrf.mxu0
        %v863 = vadd.f32 %v478, %v862
        %v864 = vpop.f32.mrf.mxu0
        %865 = vmatprep.mubr.f32.mxu0 0.0
        %v866 = vand.u32 %v282, 4294901760
        %867 = vmatmul.mubr.f32.gmra.mxu0 %v866
        %v868 = vpop.f32.mrf.mxu0
        %v869 = vadd.f32 %v488, %v868
        %v870 = vpop.f32.mrf.mxu0
        %871 = vmatprep.mubr.f32.mxu0 0.0
        %v872 = vand.u32 %v285, 4294901760
        %873 = vmatmul.mubr.f32.gmra.mxu0 %v872
        %v874 = vpop.f32.mrf.mxu0
        %v875 = vadd.f32 %v498, %v874
        %v876 = vpop.f32.mrf.mxu0
        %877 = vmatprep.mubr.f32.mxu0 0.0
        %v878 = vand.u32 %v288, 4294901760
        %879 = vmatmul.mubr.f32.gmra.mxu0 %v878
        %v880 = vpop.f32.mrf.mxu0
        %v881 = vadd.f32 %v508, %v880
        %v882 = vpop.f32.mrf.mxu0
        %883 = vmatprep.mubr.f32.mxu0 0.0
        %v884 = vand.u32 %v291, 4294901760
        %885 = vmatmul.mubr.f32.gmra.mxu0 %v884
        %v886 = vpop.f32.mrf.mxu0
        %v887 = vadd.f32 %v518, %v886
        %v888 = vpop.f32.mrf.mxu0
        %889 = vmatprep.mubr.f32.mxu0 0.0
        %v890 = vand.u32 %v294, 4294901760
        %891 = vmatmul.mubr.f32.gmra.mxu0 %v890
        %v892 = vpop.f32.mrf.mxu0
        %v893 = vadd.f32 %v528, %v892
        %v894 = vpop.f32.mrf.mxu0
        %895 = vmatprep.mubr.f32.mxu0 0.0
        %v896 = vand.u32 %v297, 4294901760
        %897 = vmatmul.mubr.f32.gmra.mxu0 %v896
        %v898 = vpop.f32.mrf.mxu0
        %v899 = vadd.f32 %v538, %v898
        %v900 = vpop.f32.mrf.mxu0
        %901 = vmatprep.mubr.f32.mxu0 0.0
        %v902 = vand.u32 %v300, 4294901760
        %903 = vmatmul.mubr.f32.gmra.mxu0 %v902
        %v904 = vpop.f32.mrf.mxu0
        %v905 = vadd.f32 %v548, %v904
        %v906 = vpop.f32.mrf.mxu0
        %907 = vmatprep.mubr.f32.mxu0 0.0
        %v908 = vand.u32 %v303, 4294901760
        %909 = vmatmul.mubr.f32.gmra.mxu0 %v908
        %v910 = vpop.f32.mrf.mxu0
        %v911 = vadd.f32 %v558, %v910
        %v912 = vpop.f32.mrf.mxu0
        %913 = vmatprep.mubr.f32.mxu0 0.0
        %v914 = vand.u32 %v306, 4294901760
        %915 = vmatmul.mubr.f32.gmra.mxu0 %v914
        %v916 = vpop.f32.mrf.mxu0
        %v917 = vadd.f32 %v568, %v916
        %v918 = vpop.f32.mrf.mxu0
        %919 = vmatprep.mubr.f32.mxu0 0.0
        %v920 = vand.u32 %v309, 4294901760
        %921 = vmatmul.mubr.f32.gmra.mxu0 %v920
        %v922 = vpop.f32.mrf.mxu0
        %v923 = vadd.f32 %v578, %v922
        %v924 = vpop.f32.mrf.mxu0
        %925 = vmatprep.mubr.f32.mxu0 0.0
        %v926 = vand.u32 %v312, 4294901760
        %927 = vmatmul.mubr.f32.gmra.mxu0 %v926
        %v928 = vpop.f32.mrf.mxu0
        %v929 = vadd.f32 %v588, %v928
        %v930 = vpop.f32.mrf.mxu0
        %931 = vmatprep.mubr.f32.mxu0 0.0
        %v932 = vand.u32 %v315, 4294901760
        %933 = vmatmul.mubr.f32.gmra.mxu0 %v932
        %v934 = vpop.f32.mrf.mxu0
        %v935 = vadd.f32 %v598, %v934
        %v936 = vpop.f32.mrf.mxu0
        %937 = vmatprep.mubr.f32.mxu0 0.0
        %v938 = vand.u32 %v318, 4294901760
        %939 = vmatmul.mubr.f32.gmra.mxu0 %v938
        %v940 = vpop.f32.mrf.mxu0
        %v941 = vadd.f32 %v608, %v940
        %v942 = vpop.f32.mrf.mxu0
        %943 = vmatprep.mubr.f32.mxu0 0.0
        %v944 = vand.u32 %v321, 4294901760
        %945 = vmatmul.mubr.f32.gmra.mxu0 %v944
        %v946 = vpop.f32.mrf.mxu0
        %v947 = vadd.f32 %v618, %v946
        %v948 = vpop.f32.mrf.mxu0
        %949 = vmatprep.mubr.f32.mxu0 0.0
        %v950 = vand.u32 %v324, 4294901760
        %951 = vmatmul.mubr.f32.gmra.mxu0 %v950
        %v952 = vpop.f32.mrf.mxu0
        %v953 = vadd.f32 %v628, %v952
        %v954 = vpop.f32.mrf.mxu0
        %955 = vmatprep.mubr.f32.mxu0 0.0
        %v956 = vand.u32 %v327, 4294901760
        %957 = vmatmul.mubr.f32.gmra.mxu0 %v956
        %v958 = vpop.f32.mrf.mxu0
        %v959 = vadd.f32 %v638, %v958
        %v960 = vpop.f32.mrf.mxu0
        %961 = vmatprep.mubr.f32.mxu0 0.0
        %v962 = vand.u32 %v330, 4294901760
        %963 = vmatmul.mubr.f32.gmra.mxu0 %v962
        %v964 = vpop.f32.mrf.mxu0
        %v965 = vadd.f32 %v648, %v964
        %v966 = vpop.f32.mrf.mxu0
        %967 = vmatprep.mubr.f32.mxu0 0.0
        %v968 = vand.u32 %v333, 4294901760
        %969 = vmatmul.mubr.f32.gmra.mxu0 %v968
        %v970 = vpop.f32.mrf.mxu0
        %v971 = vadd.f32 %v658, %v970
        %v972 = vpop.f32.mrf.mxu0
        %973 = vmatprep.mubr.f32.mxu0 0.0
        %v974 = vand.u32 %v336, 4294901760
        %975 = vmatmul.mubr.f32.gmra.mxu0 %v974
        %v976 = vpop.f32.mrf.mxu0
        %v977 = vadd.f32 %v668, %v976
        %v978 = vpop.f32.mrf.mxu0
        %979 = vmatprep.mubr.f32.mxu0 0.0
        %v980 = vand.u32 %v339, 4294901760
        %981 = vmatmul.mubr.f32.gmra.mxu0 %v980
        %v982 = vpop.f32.mrf.mxu0
        %v983 = vadd.f32 %v678, %v982
        %v984 = vpop.f32.mrf.mxu0
        %985 = vmatprep.mubr.f32.mxu0 0.0
        %v986 = vand.u32 %v342, 4294901760
        %987 = vmatmul.mubr.f32.gmra.mxu0 %v986
        %v988 = vpop.f32.mrf.mxu0
        %v989 = vadd.f32 %v688, %v988
        %v990 = vpop.f32.mrf.mxu0
        %991 = vmatprep.mubr.f32.mxu0 0.0
        %v992 = vand.u32 %v345, 4294901760
        %993 = vmatmul.mubr.f32.gmra.mxu0 %v992
        %v994 = vpop.f32.mrf.mxu0
        %v995 = vadd.f32 %v698, %v994
        %v996 = vpop.f32.mrf.mxu0
        %997 = vmatprep.mubr.f32.mxu0 0.0
        %v998 = vand.u32 %v348, 4294901760
        %999 = vmatmul.mubr.f32.gmra.mxu0 %v998
        %v1000 = vpop.f32.mrf.mxu0
        %v1001 = vadd.f32 %v708, %v1000
        %v1002 = vpop.f32.mrf.mxu0
        %1003 = vmatprep.mubr.f32.mxu0 0.0
        %v1004 = vand.u32 %v351, 4294901760
        %1005 = vmatmul.mubr.f32.gmra.mxu0 %v1004
        %v1006 = vpop.f32.mrf.mxu0
        %v1007 = vadd.f32 %v718, %v1006
        %v1008 = vpop.f32.mrf.mxu0
        %1009 = vmatprep.mubr.f32.mxu0 0.0
        %v1010 = vand.u32 %v354, 4294901760
        %1011 = vmatmul.mubr.f32.gmra.mxu0 %v1010
        %v1012 = vpop.f32.mrf.mxu0
        %v1013 = vadd.f32 %v728, %v1012
        %v1014 = vpop.f32.mrf.mxu0
        %1015 = vmatprep.mubr.f32.mxu0 0.0
        %v1016 = vand.u32 %v357, 4294901760
        %1017 = vmatmul.mubr.f32.gmra.mxu0 %v1016
        %v1018 = vpop.f32.mrf.mxu0
        %v1019 = vadd.f32 %v738, %v1018
        %v1020 = vpop.f32.mrf.mxu0
        %1021 = vmatprep.mubr.f32.mxu0 0.0
        %v1022 = vand.u32 %v360, 4294901760
        %1023 = vmatmul.mubr.f32.gmra.mxu0 %v1022
        %v1024 = vpop.f32.mrf.mxu0
        %v1025 = vadd.f32 %v748, %v1024
        %v1026 = vpop.f32.mrf.mxu0
        %1027 = vdwg.mxu0
        %1028 = vmatprep.subr.mxu0 0.0
        %1029 = vmatpush1.msra.mxu0 0.0
        %1030 = vmatprep.subr.mxu0 0.0
        %1031 = vmatpush1.msra.mxu0 0.0
        %1032 = vmatprep.subr.mxu0 0.0
        %1033 = vmatpush1.msra.mxu0 0.0
        %1034 = vmatprep.subr.mxu0 0.0
        %1035 = vmatpush1.msra.mxu0 0.0
        %1036 = vmatprep.subr.mxu0 0.0
        %1037 = vmatpush1.msra.mxu0 0.0
        %1038 = vmatprep.subr.mxu0 0.0
        %1039 = vmatpush1.msra.mxu0 0.0
        %1040 = vmatprep.subr.mxu0 0.0
        %1041 = vmatpush1.msra.mxu0 0.0
        %1042 = vmatprep.subr.mxu0 0.0
        %1043 = vmatpush1.msra.mxu0 0.0
        %1044 = vmatprep.subr.mxu0 0.0
        %1045 = vmatpush1.msra.mxu0 0.0
        %1046 = vmatprep.subr.mxu0 0.0
        %1047 = vmatpush1.msra.mxu0 0.0
        %1048 = vmatprep.subr.mxu0 0.0
        %1049 = vmatpush1.msra.mxu0 0.0
        %1050 = vmatprep.subr.mxu0 0.0
        %1051 = vmatpush1.msra.mxu0 0.0
        %1052 = vmatprep.subr.mxu0 0.0
        %v1053 = vand.u32 %v264, 4294901760
        %v1054 = vsub.f32 %v264, %v1053
        %1055 = vmatpush1.msra.mxu0 %v1054
        %1056 = vmatprep.subr.mxu0 0.0
        %v1057 = vand.u32 %v263, 4294901760
        %v1058 = vsub.f32 %v263, %v1057
        %1059 = vmatpush1.msra.mxu0 %v1058
        %1060 = vmatprep.subr.mxu0 0.0
        %v1061 = vand.u32 %v262, 4294901760
        %v1062 = vsub.f32 %v262, %v1061
        %1063 = vmatpush1.msra.mxu0 %v1062
        %1064 = vmatprep.subr.mxu0 0.0
        %v1065 = vand.u32 %v261, 4294901760
        %v1066 = vsub.f32 %v261, %v1065
        %1067 = vmatpush1.msra.mxu0 %v1066
        %1068 = vmatprep.subr.mxu0 0.0
        %1069 = vmatpush2.msra.mxu0 0.0
        %1070 = vmatprep.subr.mxu0 0.0
        %1071 = vmatpush2.msra.mxu0 0.0
        %1072 = vmatprep.subr.mxu0 0.0
        %1073 = vmatpush2.msra.mxu0 0.0
        %1074 = vmatprep.subr.mxu0 0.0
        %1075 = vmatpush2.msra.mxu0 0.0
        %1076 = vmatprep.subr.mxu0 0.0
        %1077 = vmatpush2.msra.mxu0 0.0
        %1078 = vmatprep.subr.mxu0 0.0
        %1079 = vmatpush2.msra.mxu0 0.0
        %1080 = vmatprep.subr.mxu0 0.0
        %1081 = vmatpush2.msra.mxu0 0.0
        %1082 = vmatprep.subr.mxu0 0.0
        %1083 = vmatpush2.msra.mxu0 0.0
        %1084 = vmatprep.subr.mxu0 0.0
        %1085 = vmatpush2.msra.mxu0 0.0
        %1086 = vmatprep.subr.mxu0 0.0
        %1087 = vmatpush2.msra.mxu0 0.0
        %1088 = vmatprep.subr.mxu0 0.0
        %1089 = vmatpush2.msra.mxu0 0.0
        %1090 = vmatprep.subr.mxu0 0.0
        %1091 = vmatpush2.msra.mxu0 0.0
        %1092 = vmatprep.subr.mxu0 0.0
        %1093 = vmatpush2.msra.mxu0 0.0
        %1094 = vmatprep.subr.mxu0 0.0
        %1095 = vmatpush2.msra.mxu0 0.0
        %1096 = vmatprep.subr.mxu0 0.0
        %1097 = vmatpush2.msra.mxu0 0.0
        %1098 = vmatprep.subr.mxu0 0.0
        %1099 = vmatpush2.msra.mxu0 0.0
        %1100 = vmatprep.mubr.f32.mxu0 0.0
        %v1101 = vand.u32 %v267, 4294901760
        %v1102 = vsub.f32 %v267, %v1101
        %1103 = vmatmul.mubr.f32.gmra.mxu0 %v1102
        %v1104 = vpop.f32.mrf.mxu0
        %v1105 = vadd.f32 %v839, %v1104
        %v1106 = vpop.f32.mrf.mxu0
        %1107 = vmatprep.mubr.f32.mxu0 0.0
        %v1108 = vand.u32 %v270, 4294901760
        %v1109 = vsub.f32 %v270, %v1108
        %1110 = vmatmul.mubr.f32.gmra.mxu0 %v1109
        %v1111 = vpop.f32.mrf.mxu0
        %v1112 = vadd.f32 %v845, %v1111
        %v1113 = vpop.f32.mrf.mxu0
        %1114 = vmatprep.mubr.f32.mxu0 0.0
        %v1115 = vand.u32 %v273, 4294901760
        %v1116 = vsub.f32 %v273, %v1115
        %1117 = vmatmul.mubr.f32.gmra.mxu0 %v1116
        %v1118 = vpop.f32.mrf.mxu0
        %v1119 = vadd.f32 %v851, %v1118
        %v1120 = vpop.f32.mrf.mxu0
        %1121 = vmatprep.mubr.f32.mxu0 0.0
        %v1122 = vand.u32 %v276, 4294901760
        %v1123 = vsub.f32 %v276, %v1122
        %1124 = vmatmul.mubr.f32.gmra.mxu0 %v1123
        %v1125 = vpop.f32.mrf.mxu0
        %v1126 = vadd.f32 %v857, %v1125
        %v1127 = vpop.f32.mrf.mxu0
        %1128 = vmatprep.mubr.f32.mxu0 0.0
        %v1129 = vand.u32 %v279, 4294901760
        %v1130 = vsub.f32 %v279, %v1129
        %1131 = vmatmul.mubr.f32.gmra.mxu0 %v1130
        %v1132 = vpop.f32.mrf.mxu0
        %v1133 = vadd.f32 %v863, %v1132
        %v1134 = vpop.f32.mrf.mxu0
        %1135 = vmatprep.mubr.f32.mxu0 0.0
        %v1136 = vand.u32 %v282, 4294901760
        %v1137 = vsub.f32 %v282, %v1136
        %1138 = vmatmul.mubr.f32.gmra.mxu0 %v1137
        %v1139 = vpop.f32.mrf.mxu0
        %v1140 = vadd.f32 %v869, %v1139
        %v1141 = vpop.f32.mrf.mxu0
        %1142 = vmatprep.mubr.f32.mxu0 0.0
        %v1143 = vand.u32 %v285, 4294901760
        %v1144 = vsub.f32 %v285, %v1143
        %1145 = vmatmul.mubr.f32.gmra.mxu0 %v1144
        %v1146 = vpop.f32.mrf.mxu0
        %v1147 = vadd.f32 %v875, %v1146
        %v1148 = vpop.f32.mrf.mxu0
        %1149 = vmatprep.mubr.f32.mxu0 0.0
        %v1150 = vand.u32 %v288, 4294901760
        %v1151 = vsub.f32 %v288, %v1150
        %1152 = vmatmul.mubr.f32.gmra.mxu0 %v1151
        %v1153 = vpop.f32.mrf.mxu0
        %v1154 = vadd.f32 %v881, %v1153
        %v1155 = vpop.f32.mrf.mxu0
        %1156 = vmatprep.mubr.f32.mxu0 0.0
        %v1157 = vand.u32 %v291, 4294901760
        %v1158 = vsub.f32 %v291, %v1157
        %1159 = vmatmul.mubr.f32.gmra.mxu0 %v1158
        %v1160 = vpop.f32.mrf.mxu0
        %v1161 = vadd.f32 %v887, %v1160
        %v1162 = vpop.f32.mrf.mxu0
        %1163 = vmatprep.mubr.f32.mxu0 0.0
        %v1164 = vand.u32 %v294, 4294901760
        %v1165 = vsub.f32 %v294, %v1164
        %1166 = vmatmul.mubr.f32.gmra.mxu0 %v1165
        %v1167 = vpop.f32.mrf.mxu0
        %v1168 = vadd.f32 %v893, %v1167
        %v1169 = vpop.f32.mrf.mxu0
        %1170 = vmatprep.mubr.f32.mxu0 0.0
        %v1171 = vand.u32 %v297, 4294901760
        %v1172 = vsub.f32 %v297, %v1171
        %1173 = vmatmul.mubr.f32.gmra.mxu0 %v1172
        %v1174 = vpop.f32.mrf.mxu0
        %v1175 = vadd.f32 %v899, %v1174
        %v1176 = vpop.f32.mrf.mxu0
        %1177 = vmatprep.mubr.f32.mxu0 0.0
        %v1178 = vand.u32 %v300, 4294901760
        %v1179 = vsub.f32 %v300, %v1178
        %1180 = vmatmul.mubr.f32.gmra.mxu0 %v1179
        %v1181 = vpop.f32.mrf.mxu0
        %v1182 = vadd.f32 %v905, %v1181
        %v1183 = vpop.f32.mrf.mxu0
        %1184 = vmatprep.mubr.f32.mxu0 0.0
        %v1185 = vand.u32 %v303, 4294901760
        %v1186 = vsub.f32 %v303, %v1185
        %1187 = vmatmul.mubr.f32.gmra.mxu0 %v1186
        %v1188 = vpop.f32.mrf.mxu0
        %v1189 = vadd.f32 %v911, %v1188
        %v1190 = vpop.f32.mrf.mxu0
        %1191 = vmatprep.mubr.f32.mxu0 0.0
        %v1192 = vand.u32 %v306, 4294901760
        %v1193 = vsub.f32 %v306, %v1192
        %1194 = vmatmul.mubr.f32.gmra.mxu0 %v1193
        %v1195 = vpop.f32.mrf.mxu0
        %v1196 = vadd.f32 %v917, %v1195
        %v1197 = vpop.f32.mrf.mxu0
        %1198 = vmatprep.mubr.f32.mxu0 0.0
        %v1199 = vand.u32 %v309, 4294901760
        %v1200 = vsub.f32 %v309, %v1199
        %1201 = vmatmul.mubr.f32.gmra.mxu0 %v1200
        %v1202 = vpop.f32.mrf.mxu0
        %v1203 = vadd.f32 %v923, %v1202
        %v1204 = vpop.f32.mrf.mxu0
        %1205 = vmatprep.mubr.f32.mxu0 0.0
        %v1206 = vand.u32 %v312, 4294901760
        %v1207 = vsub.f32 %v312, %v1206
        %1208 = vmatmul.mubr.f32.gmra.mxu0 %v1207
        %v1209 = vpop.f32.mrf.mxu0
        %v1210 = vadd.f32 %v929, %v1209
        %v1211 = vpop.f32.mrf.mxu0
        %1212 = vmatprep.mubr.f32.mxu0 0.0
        %v1213 = vand.u32 %v315, 4294901760
        %v1214 = vsub.f32 %v315, %v1213
        %1215 = vmatmul.mubr.f32.gmra.mxu0 %v1214
        %v1216 = vpop.f32.mrf.mxu0
        %v1217 = vadd.f32 %v935, %v1216
        %v1218 = vpop.f32.mrf.mxu0
        %1219 = vmatprep.mubr.f32.mxu0 0.0
        %v1220 = vand.u32 %v318, 4294901760
        %v1221 = vsub.f32 %v318, %v1220
        %1222 = vmatmul.mubr.f32.gmra.mxu0 %v1221
        %v1223 = vpop.f32.mrf.mxu0
        %v1224 = vadd.f32 %v941, %v1223
        %v1225 = vpop.f32.mrf.mxu0
        %1226 = vmatprep.mubr.f32.mxu0 0.0
        %v1227 = vand.u32 %v321, 4294901760
        %v1228 = vsub.f32 %v321, %v1227
        %1229 = vmatmul.mubr.f32.gmra.mxu0 %v1228
        %v1230 = vpop.f32.mrf.mxu0
        %v1231 = vadd.f32 %v947, %v1230
        %v1232 = vpop.f32.mrf.mxu0
        %1233 = vmatprep.mubr.f32.mxu0 0.0
        %v1234 = vand.u32 %v324, 4294901760
        %v1235 = vsub.f32 %v324, %v1234
        %1236 = vmatmul.mubr.f32.gmra.mxu0 %v1235
        %v1237 = vpop.f32.mrf.mxu0
        %v1238 = vadd.f32 %v953, %v1237
        %v1239 = vpop.f32.mrf.mxu0
        %1240 = vmatprep.mubr.f32.mxu0 0.0
        %v1241 = vand.u32 %v327, 4294901760
        %v1242 = vsub.f32 %v327, %v1241
        %1243 = vmatmul.mubr.f32.gmra.mxu0 %v1242
        %v1244 = vpop.f32.mrf.mxu0
        %v1245 = vadd.f32 %v959, %v1244
        %v1246 = vpop.f32.mrf.mxu0
        %1247 = vmatprep.mubr.f32.mxu0 0.0
        %v1248 = vand.u32 %v330, 4294901760
        %v1249 = vsub.f32 %v330, %v1248
        %1250 = vmatmul.mubr.f32.gmra.mxu0 %v1249
        %v1251 = vpop.f32.mrf.mxu0
        %v1252 = vadd.f32 %v965, %v1251
        %v1253 = vpop.f32.mrf.mxu0
        %1254 = vmatprep.mubr.f32.mxu0 0.0
        %v1255 = vand.u32 %v333, 4294901760
        %v1256 = vsub.f32 %v333, %v1255
        %1257 = vmatmul.mubr.f32.gmra.mxu0 %v1256
        %v1258 = vpop.f32.mrf.mxu0
        %v1259 = vadd.f32 %v971, %v1258
        %v1260 = vpop.f32.mrf.mxu0
        %1261 = vmatprep.mubr.f32.mxu0 0.0
        %v1262 = vand.u32 %v336, 4294901760
        %v1263 = vsub.f32 %v336, %v1262
        %1264 = vmatmul.mubr.f32.gmra.mxu0 %v1263
        %v1265 = vpop.f32.mrf.mxu0
        %v1266 = vadd.f32 %v977, %v1265
        %v1267 = vpop.f32.mrf.mxu0
        %1268 = vmatprep.mubr.f32.mxu0 0.0
        %v1269 = vand.u32 %v339, 4294901760
        %v1270 = vsub.f32 %v339, %v1269
        %1271 = vmatmul.mubr.f32.gmra.mxu0 %v1270
        %v1272 = vpop.f32.mrf.mxu0
        %v1273 = vadd.f32 %v983, %v1272
        %v1274 = vpop.f32.mrf.mxu0
        %1275 = vmatprep.mubr.f32.mxu0 0.0
        %v1276 = vand.u32 %v342, 4294901760
        %v1277 = vsub.f32 %v342, %v1276
        %1278 = vmatmul.mubr.f32.gmra.mxu0 %v1277
        %v1279 = vpop.f32.mrf.mxu0
        %v1280 = vadd.f32 %v989, %v1279
        %v1281 = vpop.f32.mrf.mxu0
        %1282 = vmatprep.mubr.f32.mxu0 0.0
        %v1283 = vand.u32 %v345, 4294901760
        %v1284 = vsub.f32 %v345, %v1283
        %1285 = vmatmul.mubr.f32.gmra.mxu0 %v1284
        %v1286 = vpop.f32.mrf.mxu0
        %v1287 = vadd.f32 %v995, %v1286
        %v1288 = vpop.f32.mrf.mxu0
        %1289 = vmatprep.mubr.f32.mxu0 0.0
        %v1290 = vand.u32 %v348, 4294901760
        %v1291 = vsub.f32 %v348, %v1290
        %1292 = vmatmul.mubr.f32.gmra.mxu0 %v1291
        %v1293 = vpop.f32.mrf.mxu0
        %v1294 = vadd.f32 %v1001, %v1293
        %v1295 = vpop.f32.mrf.mxu0
        %1296 = vmatprep.mubr.f32.mxu0 0.0
        %v1297 = vand.u32 %v351, 4294901760
        %v1298 = vsub.f32 %v351, %v1297
        %1299 = vmatmul.mubr.f32.gmra.mxu0 %v1298
        %v1300 = vpop.f32.mrf.mxu0
        %v1301 = vadd.f32 %v1007, %v1300
        %v1302 = vpop.f32.mrf.mxu0
        %1303 = vmatprep.mubr.f32.mxu0 0.0
        %v1304 = vand.u32 %v354, 4294901760
        %v1305 = vsub.f32 %v354, %v1304
        %1306 = vmatmul.mubr.f32.gmra.mxu0 %v1305
        %v1307 = vpop.f32.mrf.mxu0
        %v1308 = vadd.f32 %v1013, %v1307
        %v1309 = vpop.f32.mrf.mxu0
        %1310 = vmatprep.mubr.f32.mxu0 0.0
        %v1311 = vand.u32 %v357, 4294901760
        %v1312 = vsub.f32 %v357, %v1311
        %1313 = vmatmul.mubr.f32.gmra.mxu0 %v1312
        %v1314 = vpop.f32.mrf.mxu0
        %v1315 = vadd.f32 %v1019, %v1314
        %v1316 = vpop.f32.mrf.mxu0
        %1317 = vmatprep.mubr.f32.mxu0 0.0
        %v1318 = vand.u32 %v360, 4294901760
        %v1319 = vsub.f32 %v360, %v1318
        %1320 = vmatmul.mubr.f32.gmra.mxu0 %v1319
        %v1321 = vpop.f32.mrf.mxu0
        %v1322 = vadd.f32 %v1025, %v1321
        %v1323 = vpop.f32.mrf.mxu0
        %1324 = vdwg.mxu0
        %1325 = vmatprep.subr.mxu0 0.0
        %1326 = vmatpush1.msra.mxu0 0.0
        %1327 = vmatprep.subr.mxu0 0.0
        %1328 = vmatpush1.msra.mxu0 0.0
        %1329 = vmatprep.subr.mxu0 0.0
        %1330 = vmatpush1.msra.mxu0 0.0
        %1331 = vmatprep.subr.mxu0 0.0
        %1332 = vmatpush1.msra.mxu0 0.0
        %1333 = vmatprep.subr.mxu0 0.0
        %1334 = vmatpush1.msra.mxu0 0.0
        %1335 = vmatprep.subr.mxu0 0.0
        %1336 = vmatpush1.msra.mxu0 0.0
        %1337 = vmatprep.subr.mxu0 0.0
        %1338 = vmatpush1.msra.mxu0 0.0
        %1339 = vmatprep.subr.mxu0 0.0
        %1340 = vmatpush1.msra.mxu0 0.0
        %1341 = vmatprep.subr.mxu0 0.0
        %1342 = vmatpush1.msra.mxu0 0.0
        %1343 = vmatprep.subr.mxu0 0.0
        %1344 = vmatpush1.msra.mxu0 0.0
        %1345 = vmatprep.subr.mxu0 0.0
        %1346 = vmatpush1.msra.mxu0 0.0
        %1347 = vmatprep.subr.mxu0 0.0
        %1348 = vmatpush1.msra.mxu0 0.0
        %1349 = vmatprep.subr.mxu0 0.0
        %v1350 = vand.u32 %v264, 4294901760
        %1351 = vmatpush1.msra.mxu0 %v1350
        %1352 = vmatprep.subr.mxu0 0.0
        %v1353 = vand.u32 %v263, 4294901760
        %1354 = vmatpush1.msra.mxu0 %v1353
        %1355 = vmatprep.subr.mxu0 0.0
        %v1356 = vand.u32 %v262, 4294901760
        %1357 = vmatpush1.msra.mxu0 %v1356
        %1358 = vmatprep.subr.mxu0 0.0
        %v1359 = vand.u32 %v261, 4294901760
        %1360 = vmatpush1.msra.mxu0 %v1359
        %1361 = vmatprep.subr.mxu0 0.0
        %1362 = vmatpush2.msra.mxu0 0.0
        %1363 = vmatprep.subr.mxu0 0.0
        %1364 = vmatpush2.msra.mxu0 0.0
        %1365 = vmatprep.subr.mxu0 0.0
        %1366 = vmatpush2.msra.mxu0 0.0
        %1367 = vmatprep.subr.mxu0 0.0
        %1368 = vmatpush2.msra.mxu0 0.0
        %1369 = vmatprep.subr.mxu0 0.0
        %1370 = vmatpush2.msra.mxu0 0.0
        %1371 = vmatprep.subr.mxu0 0.0
        %1372 = vmatpush2.msra.mxu0 0.0
        %1373 = vmatprep.subr.mxu0 0.0
        %1374 = vmatpush2.msra.mxu0 0.0
        %1375 = vmatprep.subr.mxu0 0.0
        %1376 = vmatpush2.msra.mxu0 0.0
        %1377 = vmatprep.subr.mxu0 0.0
        %1378 = vmatpush2.msra.mxu0 0.0
        %1379 = vmatprep.subr.mxu0 0.0
        %1380 = vmatpush2.msra.mxu0 0.0
        %1381 = vmatprep.subr.mxu0 0.0
        %1382 = vmatpush2.msra.mxu0 0.0
        %1383 = vmatprep.subr.mxu0 0.0
        %1384 = vmatpush2.msra.mxu0 0.0
        %1385 = vmatprep.subr.mxu0 0.0
        %1386 = vmatpush2.msra.mxu0 0.0
        %1387 = vmatprep.subr.mxu0 0.0
        %1388 = vmatpush2.msra.mxu0 0.0
        %1389 = vmatprep.subr.mxu0 0.0
        %1390 = vmatpush2.msra.mxu0 0.0
        %1391 = vmatprep.subr.mxu0 0.0
        %1392 = vmatpush2.msra.mxu0 0.0
        %1393 = vmatprep.mubr.f32.mxu0 0.0
        %v1394 = vand.u32 %v267, 4294901760
        %v1395 = vsub.f32 %v267, %v1394
        %v1396 = vand.u32 %v1395, 4294901760
        %1397 = vmatmul.mubr.f32.gmra.mxu0 %v1396
        %v1398 = vpop.f32.mrf.mxu0
        %v1399 = vadd.f32 %v1105, %v1398
        %v1400 = vpop.f32.mrf.mxu0
        %1401 = vmatprep.mubr.f32.mxu0 0.0
        %v1402 = vand.u32 %v270, 4294901760
        %v1403 = vsub.f32 %v270, %v1402
        %v1404 = vand.u32 %v1403, 4294901760
        %1405 = vmatmul.mubr.f32.gmra.mxu0 %v1404
        %v1406 = vpop.f32.mrf.mxu0
        %v1407 = vadd.f32 %v1112, %v1406
        %v1408 = vpop.f32.mrf.mxu0
        %1409 = vmatprep.mubr.f32.mxu0 0.0
        %v1410 = vand.u32 %v273, 4294901760
        %v1411 = vsub.f32 %v273, %v1410
        %v1412 = vand.u32 %v1411, 4294901760
        %1413 = vmatmul.mubr.f32.gmra.mxu0 %v1412
        %v1414 = vpop.f32.mrf.mxu0
        %v1415 = vadd.f32 %v1119, %v1414
        %v1416 = vpop.f32.mrf.mxu0
        %1417 = vmatprep.mubr.f32.mxu0 0.0
        %v1418 = vand.u32 %v276, 4294901760
        %v1419 = vsub.f32 %v276, %v1418
        %v1420 = vand.u32 %v1419, 4294901760
        %1421 = vmatmul.mubr.f32.gmra.mxu0 %v1420
        %v1422 = vpop.f32.mrf.mxu0
        %v1423 = vadd.f32 %v1126, %v1422
        %v1424 = vpop.f32.mrf.mxu0
        %1425 = vmatprep.mubr.f32.mxu0 0.0
        %v1426 = vand.u32 %v279, 4294901760
        %v1427 = vsub.f32 %v279, %v1426
        %v1428 = vand.u32 %v1427, 4294901760
        %1429 = vmatmul.mubr.f32.gmra.mxu0 %v1428
        %v1430 = vpop.f32.mrf.mxu0
        %v1431 = vadd.f32 %v1133, %v1430
        %v1432 = vpop.f32.mrf.mxu0
        %1433 = vmatprep.mubr.f32.mxu0 0.0
        %v1434 = vand.u32 %v282, 4294901760
        %v1435 = vsub.f32 %v282, %v1434
        %v1436 = vand.u32 %v1435, 4294901760
        %1437 = vmatmul.mubr.f32.gmra.mxu0 %v1436
        %v1438 = vpop.f32.mrf.mxu0
        %v1439 = vadd.f32 %v1140, %v1438
        %v1440 = vpop.f32.mrf.mxu0
        %1441 = vmatprep.mubr.f32.mxu0 0.0
        %v1442 = vand.u32 %v285, 4294901760
        %v1443 = vsub.f32 %v285, %v1442
        %v1444 = vand.u32 %v1443, 4294901760
        %1445 = vmatmul.mubr.f32.gmra.mxu0 %v1444
        %v1446 = vpop.f32.mrf.mxu0
        %v1447 = vadd.f32 %v1147, %v1446
        %v1448 = vpop.f32.mrf.mxu0
        %1449 = vmatprep.mubr.f32.mxu0 0.0
        %v1450 = vand.u32 %v288, 4294901760
        %v1451 = vsub.f32 %v288, %v1450
        %v1452 = vand.u32 %v1451, 4294901760
        %1453 = vmatmul.mubr.f32.gmra.mxu0 %v1452
        %v1454 = vpop.f32.mrf.mxu0
        %v1455 = vadd.f32 %v1154, %v1454
        %v1456 = vpop.f32.mrf.mxu0
        %1457 = vmatprep.mubr.f32.mxu0 0.0
        %v1458 = vand.u32 %v291, 4294901760
        %v1459 = vsub.f32 %v291, %v1458
        %v1460 = vand.u32 %v1459, 4294901760
        %1461 = vmatmul.mubr.f32.gmra.mxu0 %v1460
        %v1462 = vpop.f32.mrf.mxu0
        %v1463 = vadd.f32 %v1161, %v1462
        %v1464 = vpop.f32.mrf.mxu0
        %1465 = vmatprep.mubr.f32.mxu0 0.0
        %v1466 = vand.u32 %v294, 4294901760
        %v1467 = vsub.f32 %v294, %v1466
        %v1468 = vand.u32 %v1467, 4294901760
        %1469 = vmatmul.mubr.f32.gmra.mxu0 %v1468
        %v1470 = vpop.f32.mrf.mxu0
        %v1471 = vadd.f32 %v1168, %v1470
        %v1472 = vpop.f32.mrf.mxu0
        %1473 = vmatprep.mubr.f32.mxu0 0.0
        %v1474 = vand.u32 %v297, 4294901760
        %v1475 = vsub.f32 %v297, %v1474
        %v1476 = vand.u32 %v1475, 4294901760
        %1477 = vmatmul.mubr.f32.gmra.mxu0 %v1476
        %v1478 = vpop.f32.mrf.mxu0
        %v1479 = vadd.f32 %v1175, %v1478
        %v1480 = vpop.f32.mrf.mxu0
        %1481 = vmatprep.mubr.f32.mxu0 0.0
        %v1482 = vand.u32 %v300, 4294901760
        %v1483 = vsub.f32 %v300, %v1482
        %v1484 = vand.u32 %v1483, 4294901760
        %1485 = vmatmul.mubr.f32.gmra.mxu0 %v1484
        %v1486 = vpop.f32.mrf.mxu0
        %v1487 = vadd.f32 %v1182, %v1486
        %v1488 = vpop.f32.mrf.mxu0
        %1489 = vmatprep.mubr.f32.mxu0 0.0
        %v1490 = vand.u32 %v303, 4294901760
        %v1491 = vsub.f32 %v303, %v1490
        %v1492 = vand.u32 %v1491, 4294901760
        %1493 = vmatmul.mubr.f32.gmra.mxu0 %v1492
        %v1494 = vpop.f32.mrf.mxu0
        %v1495 = vadd.f32 %v1189, %v1494
        %v1496 = vpop.f32.mrf.mxu0
        %1497 = vmatprep.mubr.f32.mxu0 0.0
        %v1498 = vand.u32 %v306, 4294901760
        %v1499 = vsub.f32 %v306, %v1498
        %v1500 = vand.u32 %v1499, 4294901760
        %1501 = vmatmul.mubr.f32.gmra.mxu0 %v1500
        %v1502 = vpop.f32.mrf.mxu0
        %v1503 = vadd.f32 %v1196, %v1502
        %v1504 = vpop.f32.mrf.mxu0
        %1505 = vmatprep.mubr.f32.mxu0 0.0
        %v1506 = vand.u32 %v309, 4294901760
        %v1507 = vsub.f32 %v309, %v1506
        %v1508 = vand.u32 %v1507, 4294901760
        %1509 = vmatmul.mubr.f32.gmra.mxu0 %v1508
        %v1510 = vpop.f32.mrf.mxu0
        %v1511 = vadd.f32 %v1203, %v1510
        %v1512 = vpop.f32.mrf.mxu0
        %1513 = vmatprep.mubr.f32.mxu0 0.0
        %v1514 = vand.u32 %v312, 4294901760
        %v1515 = vsub.f32 %v312, %v1514
        %v1516 = vand.u32 %v1515, 4294901760
        %1517 = vmatmul.mubr.f32.gmra.mxu0 %v1516
        %v1518 = vpop.f32.mrf.mxu0
        %v1519 = vadd.f32 %v1210, %v1518
        %v1520 = vpop.f32.mrf.mxu0
        %1521 = vmatprep.mubr.f32.mxu0 0.0
        %v1522 = vand.u32 %v315, 4294901760
        %v1523 = vsub.f32 %v315, %v1522
        %v1524 = vand.u32 %v1523, 4294901760
        %1525 = vmatmul.mubr.f32.gmra.mxu0 %v1524
        %v1526 = vpop.f32.mrf.mxu0
        %v1527 = vadd.f32 %v1217, %v1526
        %v1528 = vpop.f32.mrf.mxu0
        %1529 = vmatprep.mubr.f32.mxu0 0.0
        %v1530 = vand.u32 %v318, 4294901760
        %v1531 = vsub.f32 %v318, %v1530
        %v1532 = vand.u32 %v1531, 4294901760
        %1533 = vmatmul.mubr.f32.gmra.mxu0 %v1532
        %v1534 = vpop.f32.mrf.mxu0
        %v1535 = vadd.f32 %v1224, %v1534
        %v1536 = vpop.f32.mrf.mxu0
        %1537 = vmatprep.mubr.f32.mxu0 0.0
        %v1538 = vand.u32 %v321, 4294901760
        %v1539 = vsub.f32 %v321, %v1538
        %v1540 = vand.u32 %v1539, 4294901760
        %1541 = vmatmul.mubr.f32.gmra.mxu0 %v1540
        %v1542 = vpop.f32.mrf.mxu0
        %v1543 = vadd.f32 %v1231, %v1542
        %v1544 = vpop.f32.mrf.mxu0
        %1545 = vmatprep.mubr.f32.mxu0 0.0
        %v1546 = vand.u32 %v324, 4294901760
        %v1547 = vsub.f32 %v324, %v1546
        %v1548 = vand.u32 %v1547, 4294901760
        %1549 = vmatmul.mubr.f32.gmra.mxu0 %v1548
        %v1550 = vpop.f32.mrf.mxu0
        %v1551 = vadd.f32 %v1238, %v1550
        %v1552 = vpop.f32.mrf.mxu0
        %1553 = vmatprep.mubr.f32.mxu0 0.0
        %v1554 = vand.u32 %v327, 4294901760
        %v1555 = vsub.f32 %v327, %v1554
        %v1556 = vand.u32 %v1555, 4294901760
        %1557 = vmatmul.mubr.f32.gmra.mxu0 %v1556
        %v1558 = vpop.f32.mrf.mxu0
        %v1559 = vadd.f32 %v1245, %v1558
        %v1560 = vpop.f32.mrf.mxu0
        %1561 = vmatprep.mubr.f32.mxu0 0.0
        %v1562 = vand.u32 %v330, 4294901760
        %v1563 = vsub.f32 %v330, %v1562
        %v1564 = vand.u32 %v1563, 4294901760
        %1565 = vmatmul.mubr.f32.gmra.mxu0 %v1564
        %v1566 = vpop.f32.mrf.mxu0
        %v1567 = vadd.f32 %v1252, %v1566
        %v1568 = vpop.f32.mrf.mxu0
        %1569 = vmatprep.mubr.f32.mxu0 0.0
        %v1570 = vand.u32 %v333, 4294901760
        %v1571 = vsub.f32 %v333, %v1570
        %v1572 = vand.u32 %v1571, 4294901760
        %1573 = vmatmul.mubr.f32.gmra.mxu0 %v1572
        %v1574 = vpop.f32.mrf.mxu0
        %v1575 = vadd.f32 %v1259, %v1574
        %v1576 = vpop.f32.mrf.mxu0
        %1577 = vmatprep.mubr.f32.mxu0 0.0
        %v1578 = vand.u32 %v336, 4294901760
        %v1579 = vsub.f32 %v336, %v1578
        %v1580 = vand.u32 %v1579, 4294901760
        %1581 = vmatmul.mubr.f32.gmra.mxu0 %v1580
        %v1582 = vpop.f32.mrf.mxu0
        %v1583 = vadd.f32 %v1266, %v1582
        %v1584 = vpop.f32.mrf.mxu0
        %1585 = vmatprep.mubr.f32.mxu0 0.0
        %v1586 = vand.u32 %v339, 4294901760
        %v1587 = vsub.f32 %v339, %v1586
        %v1588 = vand.u32 %v1587, 4294901760
        %1589 = vmatmul.mubr.f32.gmra.mxu0 %v1588
        %v1590 = vpop.f32.mrf.mxu0
        %v1591 = vadd.f32 %v1273, %v1590
        %v1592 = vpop.f32.mrf.mxu0
        %1593 = vmatprep.mubr.f32.mxu0 0.0
        %v1594 = vand.u32 %v342, 4294901760
        %v1595 = vsub.f32 %v342, %v1594
        %v1596 = vand.u32 %v1595, 4294901760
        %1597 = vmatmul.mubr.f32.gmra.mxu0 %v1596
        %v1598 = vpop.f32.mrf.mxu0
        %v1599 = vadd.f32 %v1280, %v1598
        %v1600 = vpop.f32.mrf.mxu0
        %1601 = vmatprep.mubr.f32.mxu0 0.0
        %v1602 = vand.u32 %v345, 4294901760
        %v1603 = vsub.f32 %v345, %v1602
        %v1604 = vand.u32 %v1603, 4294901760
        %1605 = vmatmul.mubr.f32.gmra.mxu0 %v1604
        %v1606 = vpop.f32.mrf.mxu0
        %v1607 = vadd.f32 %v1287, %v1606
        %v1608 = vpop.f32.mrf.mxu0
        %1609 = vmatprep.mubr.f32.mxu0 0.0
        %v1610 = vand.u32 %v348, 4294901760
        %v1611 = vsub.f32 %v348, %v1610
        %v1612 = vand.u32 %v1611, 4294901760
        %1613 = vmatmul.mubr.f32.gmra.mxu0 %v1612
        %v1614 = vpop.f32.mrf.mxu0
        %v1615 = vadd.f32 %v1294, %v1614
        %v1616 = vpop.f32.mrf.mxu0
        %1617 = vmatprep.mubr.f32.mxu0 0.0
        %v1618 = vand.u32 %v351, 4294901760
        %v1619 = vsub.f32 %v351, %v1618
        %v1620 = vand.u32 %v1619, 4294901760
        %1621 = vmatmul.mubr.f32.gmra.mxu0 %v1620
        %v1622 = vpop.f32.mrf.mxu0
        %v1623 = vadd.f32 %v1301, %v1622
        %v1624 = vpop.f32.mrf.mxu0
        %1625 = vmatprep.mubr.f32.mxu0 0.0
        %v1626 = vand.u32 %v354, 4294901760
        %v1627 = vsub.f32 %v354, %v1626
        %v1628 = vand.u32 %v1627, 4294901760
        %1629 = vmatmul.mubr.f32.gmra.mxu0 %v1628
        %v1630 = vpop.f32.mrf.mxu0
        %v1631 = vadd.f32 %v1308, %v1630
        %v1632 = vpop.f32.mrf.mxu0
        %1633 = vmatprep.mubr.f32.mxu0 0.0
        %v1634 = vand.u32 %v357, 4294901760
        %v1635 = vsub.f32 %v357, %v1634
        %v1636 = vand.u32 %v1635, 4294901760
        %1637 = vmatmul.mubr.f32.gmra.mxu0 %v1636
        %v1638 = vpop.f32.mrf.mxu0
        %v1639 = vadd.f32 %v1315, %v1638
        %v1640 = vpop.f32.mrf.mxu0
        %1641 = vmatprep.mubr.f32.mxu0 0.0
        %v1642 = vand.u32 %v360, 4294901760
        %v1643 = vsub.f32 %v360, %v1642
        %v1644 = vand.u32 %v1643, 4294901760
        %1645 = vmatmul.mubr.f32.gmra.mxu0 %v1644
        %v1646 = vpop.f32.mrf.mxu0
        %v1647 = vadd.f32 %v1322, %v1646
        %v1648 = vpop.f32.mrf.mxu0
        %1649 = vdwg.mxu0
        %1650 = vmatprep.subr.mxu0 0.0
        %1651 = vmatpush1.msra.mxu0 0.0
        %1652 = vmatprep.subr.mxu0 0.0
        %1653 = vmatpush1.msra.mxu0 0.0
        %1654 = vmatprep.subr.mxu0 0.0
        %1655 = vmatpush1.msra.mxu0 0.0
        %1656 = vmatprep.subr.mxu0 0.0
        %1657 = vmatpush1.msra.mxu0 0.0
        %1658 = vmatprep.subr.mxu0 0.0
        %1659 = vmatpush1.msra.mxu0 0.0
        %1660 = vmatprep.subr.mxu0 0.0
        %1661 = vmatpush1.msra.mxu0 0.0
        %1662 = vmatprep.subr.mxu0 0.0
        %1663 = vmatpush1.msra.mxu0 0.0
        %1664 = vmatprep.subr.mxu0 0.0
        %1665 = vmatpush1.msra.mxu0 0.0
        %1666 = vmatprep.subr.mxu0 0.0
        %1667 = vmatpush1.msra.mxu0 0.0
        %1668 = vmatprep.subr.mxu0 0.0
        %1669 = vmatpush1.msra.mxu0 0.0
        %1670 = vmatprep.subr.mxu0 0.0
        %1671 = vmatpush1.msra.mxu0 0.0
        %1672 = vmatprep.subr.mxu0 0.0
        %1673 = vmatpush1.msra.mxu0 0.0
        %1674 = vmatprep.subr.mxu0 0.0
        %v1675 = vand.u32 %v264, 4294901760
        %v1676 = vsub.f32 %v264, %v1675
        %v1677 = vand.u32 %v1676, 4294901760
        %1678 = vmatpush1.msra.mxu0 %v1677
        %1679 = vmatprep.subr.mxu0 0.0
        %v1680 = vand.u32 %v263, 4294901760
        %v1681 = vsub.f32 %v263, %v1680
        %v1682 = vand.u32 %v1681, 4294901760
        %1683 = vmatpush1.msra.mxu0 %v1682
        %1684 = vmatprep.subr.mxu0 0.0
        %v1685 = vand.u32 %v262, 4294901760
        %v1686 = vsub.f32 %v262, %v1685
        %v1687 = vand.u32 %v1686, 4294901760
        %1688 = vmatpush1.msra.mxu0 %v1687
        %1689 = vmatprep.subr.mxu0 0.0
        %v1690 = vand.u32 %v261, 4294901760
        %v1691 = vsub.f32 %v261, %v1690
        %v1692 = vand.u32 %v1691, 4294901760
        %1693 = vmatpush1.msra.mxu0 %v1692
        %1694 = vmatprep.subr.mxu0 0.0
        %1695 = vmatpush2.msra.mxu0 0.0
        %1696 = vmatprep.subr.mxu0 0.0
        %1697 = vmatpush2.msra.mxu0 0.0
        %1698 = vmatprep.subr.mxu0 0.0
        %1699 = vmatpush2.msra.mxu0 0.0
        %1700 = vmatprep.subr.mxu0 0.0
        %1701 = vmatpush2.msra.mxu0 0.0
        %1702 = vmatprep.subr.mxu0 0.0
        %1703 = vmatpush2.msra.mxu0 0.0
        %1704 = vmatprep.subr.mxu0 0.0
        %1705 = vmatpush2.msra.mxu0 0.0
        %1706 = vmatprep.subr.mxu0 0.0
        %1707 = vmatpush2.msra.mxu0 0.0
        %1708 = vmatprep.subr.mxu0 0.0
        %1709 = vmatpush2.msra.mxu0 0.0
        %1710 = vmatprep.subr.mxu0 0.0
        %1711 = vmatpush2.msra.mxu0 0.0
        %1712 = vmatprep.subr.mxu0 0.0
        %1713 = vmatpush2.msra.mxu0 0.0
        %1714 = vmatprep.subr.mxu0 0.0
        %1715 = vmatpush2.msra.mxu0 0.0
        %1716 = vmatprep.subr.mxu0 0.0
        %1717 = vmatpush2.msra.mxu0 0.0
        %1718 = vmatprep.subr.mxu0 0.0
        %1719 = vmatpush2.msra.mxu0 0.0
        %1720 = vmatprep.subr.mxu0 0.0
        %1721 = vmatpush2.msra.mxu0 0.0
        %1722 = vmatprep.subr.mxu0 0.0
        %1723 = vmatpush2.msra.mxu0 0.0
        %1724 = vmatprep.subr.mxu0 0.0
        %1725 = vmatpush2.msra.mxu0 0.0
        %1726 = vmatprep.mubr.f32.mxu0 0.0
        %v1727 = vand.u32 %v267, 4294901760
        %1728 = vmatmul.mubr.f32.gmra.mxu0 %v1727
        %v1729 = vpop.f32.mrf.mxu0
        %v1730 = vadd.f32 %v1399, %v1729
        %v1731 = vpop.f32.mrf.mxu0
        %1732 = vmatprep.mubr.f32.mxu0 0.0
        %v1733 = vand.u32 %v270, 4294901760
        %1734 = vmatmul.mubr.f32.gmra.mxu0 %v1733
        %v1735 = vpop.f32.mrf.mxu0
        %v1736 = vadd.f32 %v1407, %v1735
        %v1737 = vpop.f32.mrf.mxu0
        %1738 = vmatprep.mubr.f32.mxu0 0.0
        %v1739 = vand.u32 %v273, 4294901760
        %1740 = vmatmul.mubr.f32.gmra.mxu0 %v1739
        %v1741 = vpop.f32.mrf.mxu0
        %v1742 = vadd.f32 %v1415, %v1741
        %v1743 = vpop.f32.mrf.mxu0
        %1744 = vmatprep.mubr.f32.mxu0 0.0
        %v1745 = vand.u32 %v276, 4294901760
        %1746 = vmatmul.mubr.f32.gmra.mxu0 %v1745
        %v1747 = vpop.f32.mrf.mxu0
        %v1748 = vadd.f32 %v1423, %v1747
        %v1749 = vpop.f32.mrf.mxu0
        %1750 = vmatprep.mubr.f32.mxu0 0.0
        %v1751 = vand.u32 %v279, 4294901760
        %1752 = vmatmul.mubr.f32.gmra.mxu0 %v1751
        %v1753 = vpop.f32.mrf.mxu0
        %v1754 = vadd.f32 %v1431, %v1753
        %v1755 = vpop.f32.mrf.mxu0
        %1756 = vmatprep.mubr.f32.mxu0 0.0
        %v1757 = vand.u32 %v282, 4294901760
        %1758 = vmatmul.mubr.f32.gmra.mxu0 %v1757
        %v1759 = vpop.f32.mrf.mxu0
        %v1760 = vadd.f32 %v1439, %v1759
        %v1761 = vpop.f32.mrf.mxu0
        %1762 = vmatprep.mubr.f32.mxu0 0.0
        %v1763 = vand.u32 %v285, 4294901760
        %1764 = vmatmul.mubr.f32.gmra.mxu0 %v1763
        %v1765 = vpop.f32.mrf.mxu0
        %v1766 = vadd.f32 %v1447, %v1765
        %v1767 = vpop.f32.mrf.mxu0
        %1768 = vmatprep.mubr.f32.mxu0 0.0
        %v1769 = vand.u32 %v288, 4294901760
        %1770 = vmatmul.mubr.f32.gmra.mxu0 %v1769
        %v1771 = vpop.f32.mrf.mxu0
        %v1772 = vadd.f32 %v1455, %v1771
        %v1773 = vpop.f32.mrf.mxu0
        %1774 = vmatprep.mubr.f32.mxu0 0.0
        %v1775 = vand.u32 %v291, 4294901760
        %1776 = vmatmul.mubr.f32.gmra.mxu0 %v1775
        %v1777 = vpop.f32.mrf.mxu0
        %v1778 = vadd.f32 %v1463, %v1777
        %v1779 = vpop.f32.mrf.mxu0
        %1780 = vmatprep.mubr.f32.mxu0 0.0
        %v1781 = vand.u32 %v294, 4294901760
        %1782 = vmatmul.mubr.f32.gmra.mxu0 %v1781
        %v1783 = vpop.f32.mrf.mxu0
        %v1784 = vadd.f32 %v1471, %v1783
        %v1785 = vpop.f32.mrf.mxu0
        %1786 = vmatprep.mubr.f32.mxu0 0.0
        %v1787 = vand.u32 %v297, 4294901760
        %1788 = vmatmul.mubr.f32.gmra.mxu0 %v1787
        %v1789 = vpop.f32.mrf.mxu0
        %v1790 = vadd.f32 %v1479, %v1789
        %v1791 = vpop.f32.mrf.mxu0
        %1792 = vmatprep.mubr.f32.mxu0 0.0
        %v1793 = vand.u32 %v300, 4294901760
        %1794 = vmatmul.mubr.f32.gmra.mxu0 %v1793
        %v1795 = vpop.f32.mrf.mxu0
        %v1796 = vadd.f32 %v1487, %v1795
        %v1797 = vpop.f32.mrf.mxu0
        %1798 = vmatprep.mubr.f32.mxu0 0.0
        %v1799 = vand.u32 %v303, 4294901760
        %1800 = vmatmul.mubr.f32.gmra.mxu0 %v1799
        %v1801 = vpop.f32.mrf.mxu0
        %v1802 = vadd.f32 %v1495, %v1801
        %v1803 = vpop.f32.mrf.mxu0
        %1804 = vmatprep.mubr.f32.mxu0 0.0
        %v1805 = vand.u32 %v306, 4294901760
        %1806 = vmatmul.mubr.f32.gmra.mxu0 %v1805
        %v1807 = vpop.f32.mrf.mxu0
        %v1808 = vadd.f32 %v1503, %v1807
        %v1809 = vpop.f32.mrf.mxu0
        %1810 = vmatprep.mubr.f32.mxu0 0.0
        %v1811 = vand.u32 %v309, 4294901760
        %1812 = vmatmul.mubr.f32.gmra.mxu0 %v1811
        %v1813 = vpop.f32.mrf.mxu0
        %v1814 = vadd.f32 %v1511, %v1813
        %v1815 = vpop.f32.mrf.mxu0
        %1816 = vmatprep.mubr.f32.mxu0 0.0
        %v1817 = vand.u32 %v312, 4294901760
        %1818 = vmatmul.mubr.f32.gmra.mxu0 %v1817
        %v1819 = vpop.f32.mrf.mxu0
        %v1820 = vadd.f32 %v1519, %v1819
        %v1821 = vpop.f32.mrf.mxu0
        %1822 = vmatprep.mubr.f32.mxu0 0.0
        %v1823 = vand.u32 %v315, 4294901760
        %1824 = vmatmul.mubr.f32.gmra.mxu0 %v1823
        %v1825 = vpop.f32.mrf.mxu0
        %v1826 = vadd.f32 %v1527, %v1825
        %v1827 = vpop.f32.mrf.mxu0
        %1828 = vmatprep.mubr.f32.mxu0 0.0
        %v1829 = vand.u32 %v318, 4294901760
        %1830 = vmatmul.mubr.f32.gmra.mxu0 %v1829
        %v1831 = vpop.f32.mrf.mxu0
        %v1832 = vadd.f32 %v1535, %v1831
        %v1833 = vpop.f32.mrf.mxu0
        %1834 = vmatprep.mubr.f32.mxu0 0.0
        %v1835 = vand.u32 %v321, 4294901760
        %1836 = vmatmul.mubr.f32.gmra.mxu0 %v1835
        %v1837 = vpop.f32.mrf.mxu0
        %v1838 = vadd.f32 %v1543, %v1837
        %v1839 = vpop.f32.mrf.mxu0
        %1840 = vmatprep.mubr.f32.mxu0 0.0
        %v1841 = vand.u32 %v324, 4294901760
        %1842 = vmatmul.mubr.f32.gmra.mxu0 %v1841
        %v1843 = vpop.f32.mrf.mxu0
        %v1844 = vadd.f32 %v1551, %v1843
        %v1845 = vpop.f32.mrf.mxu0
        %1846 = vmatprep.mubr.f32.mxu0 0.0
        %v1847 = vand.u32 %v327, 4294901760
        %1848 = vmatmul.mubr.f32.gmra.mxu0 %v1847
        %v1849 = vpop.f32.mrf.mxu0
        %v1850 = vadd.f32 %v1559, %v1849
        %v1851 = vpop.f32.mrf.mxu0
        %1852 = vmatprep.mubr.f32.mxu0 0.0
        %v1853 = vand.u32 %v330, 4294901760
        %1854 = vmatmul.mubr.f32.gmra.mxu0 %v1853
        %v1855 = vpop.f32.mrf.mxu0
        %v1856 = vadd.f32 %v1567, %v1855
        %v1857 = vpop.f32.mrf.mxu0
        %1858 = vmatprep.mubr.f32.mxu0 0.0
        %v1859 = vand.u32 %v333, 4294901760
        %1860 = vmatmul.mubr.f32.gmra.mxu0 %v1859
        %v1861 = vpop.f32.mrf.mxu0
        %v1862 = vadd.f32 %v1575, %v1861
        %v1863 = vpop.f32.mrf.mxu0
        %1864 = vmatprep.mubr.f32.mxu0 0.0
        %v1865 = vand.u32 %v336, 4294901760
        %1866 = vmatmul.mubr.f32.gmra.mxu0 %v1865
        %v1867 = vpop.f32.mrf.mxu0
        %v1868 = vadd.f32 %v1583, %v1867
        %v1869 = vpop.f32.mrf.mxu0
        %1870 = vmatprep.mubr.f32.mxu0 0.0
        %v1871 = vand.u32 %v339, 4294901760
        %1872 = vmatmul.mubr.f32.gmra.mxu0 %v1871
        %v1873 = vpop.f32.mrf.mxu0
        %v1874 = vadd.f32 %v1591, %v1873
        %v1875 = vpop.f32.mrf.mxu0
        %1876 = vmatprep.mubr.f32.mxu0 0.0
        %v1877 = vand.u32 %v342, 4294901760
        %1878 = vmatmul.mubr.f32.gmra.mxu0 %v1877
        %v1879 = vpop.f32.mrf.mxu0
        %v1880 = vadd.f32 %v1599, %v1879
        %v1881 = vpop.f32.mrf.mxu0
        %1882 = vmatprep.mubr.f32.mxu0 0.0
        %v1883 = vand.u32 %v345, 4294901760
        %1884 = vmatmul.mubr.f32.gmra.mxu0 %v1883
        %v1885 = vpop.f32.mrf.mxu0
        %v1886 = vadd.f32 %v1607, %v1885
        %v1887 = vpop.f32.mrf.mxu0
        %1888 = vmatprep.mubr.f32.mxu0 0.0
        %v1889 = vand.u32 %v348, 4294901760
        %1890 = vmatmul.mubr.f32.gmra.mxu0 %v1889
        %v1891 = vpop.f32.mrf.mxu0
        %v1892 = vadd.f32 %v1615, %v1891
        %v1893 = vpop.f32.mrf.mxu0
        %1894 = vmatprep.mubr.f32.mxu0 0.0
        %v1895 = vand.u32 %v351, 4294901760
        %1896 = vmatmul.mubr.f32.gmra.mxu0 %v1895
        %v1897 = vpop.f32.mrf.mxu0
        %v1898 = vadd.f32 %v1623, %v1897
        %v1899 = vpop.f32.mrf.mxu0
        %1900 = vmatprep.mubr.f32.mxu0 0.0
        %v1901 = vand.u32 %v354, 4294901760
        %1902 = vmatmul.mubr.f32.gmra.mxu0 %v1901
        %v1903 = vpop.f32.mrf.mxu0
        %v1904 = vadd.f32 %v1631, %v1903
        %v1905 = vpop.f32.mrf.mxu0
        %1906 = vmatprep.mubr.f32.mxu0 0.0
        %v1907 = vand.u32 %v357, 4294901760
        %1908 = vmatmul.mubr.f32.gmra.mxu0 %v1907
        %v1909 = vpop.f32.mrf.mxu0
        %v1910 = vadd.f32 %v1639, %v1909
        %v1911 = vpop.f32.mrf.mxu0
        %1912 = vmatprep.mubr.f32.mxu0 0.0
        %v1913 = vand.u32 %v360, 4294901760
        %1914 = vmatmul.mubr.f32.gmra.mxu0 %v1913
        %v1915 = vpop.f32.mrf.mxu0
        %v1916 = vadd.f32 %v1647, %v1915
        %v1917 = vpop.f32.mrf.mxu0
        %1918 = vdwg.mxu0
        %1919 = vmatprep.subr.mxu0 0.0
        %1920 = vmatpush1.msra.mxu0 0.0
        %1921 = vmatprep.subr.mxu0 0.0
        %1922 = vmatpush1.msra.mxu0 0.0
        %1923 = vmatprep.subr.mxu0 0.0
        %1924 = vmatpush1.msra.mxu0 0.0
        %1925 = vmatprep.subr.mxu0 0.0
        %1926 = vmatpush1.msra.mxu0 0.0
        %1927 = vmatprep.subr.mxu0 0.0
        %1928 = vmatpush1.msra.mxu0 0.0
        %1929 = vmatprep.subr.mxu0 0.0
        %1930 = vmatpush1.msra.mxu0 0.0
        %1931 = vmatprep.subr.mxu0 0.0
        %1932 = vmatpush1.msra.mxu0 0.0
        %1933 = vmatprep.subr.mxu0 0.0
        %1934 = vmatpush1.msra.mxu0 0.0
        %1935 = vmatprep.subr.mxu0 0.0
        %1936 = vmatpush1.msra.mxu0 0.0
        %1937 = vmatprep.subr.mxu0 0.0
        %1938 = vmatpush1.msra.mxu0 0.0
        %1939 = vmatprep.subr.mxu0 0.0
        %1940 = vmatpush1.msra.mxu0 0.0
        %1941 = vmatprep.subr.mxu0 0.0
        %1942 = vmatpush1.msra.mxu0 0.0
        %1943 = vmatprep.subr.mxu0 0.0
        %v1944 = vand.u32 %v264, 4294901760
        %1945 = vmatpush1.msra.mxu0 %v1944
        %1946 = vmatprep.subr.mxu0 0.0
        %v1947 = vand.u32 %v263, 4294901760
        %1948 = vmatpush1.msra.mxu0 %v1947
        %1949 = vmatprep.subr.mxu0 0.0
        %v1950 = vand.u32 %v262, 4294901760
        %1951 = vmatpush1.msra.mxu0 %v1950
        %1952 = vmatprep.subr.mxu0 0.0
        %v1953 = vand.u32 %v261, 4294901760
        %1954 = vmatpush1.msra.mxu0 %v1953
        %1955 = vmatprep.subr.mxu0 0.0
        %1956 = vmatpush2.msra.mxu0 0.0
        %1957 = vmatprep.subr.mxu0 0.0
        %1958 = vmatpush2.msra.mxu0 0.0
        %1959 = vmatprep.subr.mxu0 0.0
        %1960 = vmatpush2.msra.mxu0 0.0
        %1961 = vmatprep.subr.mxu0 0.0
        %1962 = vmatpush2.msra.mxu0 0.0
        %1963 = vmatprep.subr.mxu0 0.0
        %1964 = vmatpush2.msra.mxu0 0.0
        %1965 = vmatprep.subr.mxu0 0.0
        %1966 = vmatpush2.msra.mxu0 0.0
        %1967 = vmatprep.subr.mxu0 0.0
        %1968 = vmatpush2.msra.mxu0 0.0
        %1969 = vmatprep.subr.mxu0 0.0
        %1970 = vmatpush2.msra.mxu0 0.0
        %1971 = vmatprep.subr.mxu0 0.0
        %1972 = vmatpush2.msra.mxu0 0.0
        %1973 = vmatprep.subr.mxu0 0.0
        %1974 = vmatpush2.msra.mxu0 0.0
        %1975 = vmatprep.subr.mxu0 0.0
        %1976 = vmatpush2.msra.mxu0 0.0
        %1977 = vmatprep.subr.mxu0 0.0
        %1978 = vmatpush2.msra.mxu0 0.0
        %1979 = vmatprep.subr.mxu0 0.0
        %1980 = vmatpush2.msra.mxu0 0.0
        %1981 = vmatprep.subr.mxu0 0.0
        %1982 = vmatpush2.msra.mxu0 0.0
        %1983 = vmatprep.subr.mxu0 0.0
        %1984 = vmatpush2.msra.mxu0 0.0
        %1985 = vmatprep.subr.mxu0 0.0
        %1986 = vmatpush2.msra.mxu0 0.0
        %1987 = vmatprep.mubr.f32.mxu0 0.0
        %v1988 = vand.u32 %v267, 4294901760
        %1989 = vmatmul.mubr.f32.gmra.mxu0 %v1988
        %v1990 = vpop.f32.mrf.mxu0
        %v1991 = vadd.f32 %v1730, %v1990
        %v1992 = vpop.f32.mrf.mxu0
        %1993 = vmatprep.mubr.f32.mxu0 0.0
        %v1994 = vand.u32 %v270, 4294901760
        %1995 = vmatmul.mubr.f32.gmra.mxu0 %v1994
        %v1996 = vpop.f32.mrf.mxu0
        %v1997 = vadd.f32 %v1736, %v1996
        %v1998 = vpop.f32.mrf.mxu0
        %1999 = vmatprep.mubr.f32.mxu0 0.0
        %v2000 = vand.u32 %v273, 4294901760
        %2001 = vmatmul.mubr.f32.gmra.mxu0 %v2000
        %v2002 = vpop.f32.mrf.mxu0
        %v2003 = vadd.f32 %v1742, %v2002
        %v2004 = vpop.f32.mrf.mxu0
        %2005 = vmatprep.mubr.f32.mxu0 0.0
        %v2006 = vand.u32 %v276, 4294901760
        %2007 = vmatmul.mubr.f32.gmra.mxu0 %v2006
        %v2008 = vpop.f32.mrf.mxu0
        %v2009 = vadd.f32 %v1748, %v2008
        %v2010 = vpop.f32.mrf.mxu0
        %2011 = vmatprep.mubr.f32.mxu0 0.0
        %v2012 = vand.u32 %v279, 4294901760
        %2013 = vmatmul.mubr.f32.gmra.mxu0 %v2012
        %v2014 = vpop.f32.mrf.mxu0
        %v2015 = vadd.f32 %v1754, %v2014
        %v2016 = vpop.f32.mrf.mxu0
        %2017 = vmatprep.mubr.f32.mxu0 0.0
        %v2018 = vand.u32 %v282, 4294901760
        %2019 = vmatmul.mubr.f32.gmra.mxu0 %v2018
        %v2020 = vpop.f32.mrf.mxu0
        %v2021 = vadd.f32 %v1760, %v2020
        %v2022 = vpop.f32.mrf.mxu0
        %2023 = vmatprep.mubr.f32.mxu0 0.0
        %v2024 = vand.u32 %v285, 4294901760
        %2025 = vmatmul.mubr.f32.gmra.mxu0 %v2024
        %v2026 = vpop.f32.mrf.mxu0
        %v2027 = vadd.f32 %v1766, %v2026
        %v2028 = vpop.f32.mrf.mxu0
        %2029 = vmatprep.mubr.f32.mxu0 0.0
        %v2030 = vand.u32 %v288, 4294901760
        %2031 = vmatmul.mubr.f32.gmra.mxu0 %v2030
        %v2032 = vpop.f32.mrf.mxu0
        %v2033 = vadd.f32 %v1772, %v2032
        %v2034 = vpop.f32.mrf.mxu0
        %2035 = vmatprep.mubr.f32.mxu0 0.0
        %v2036 = vand.u32 %v291, 4294901760
        %2037 = vmatmul.mubr.f32.gmra.mxu0 %v2036
        %v2038 = vpop.f32.mrf.mxu0
        %v2039 = vadd.f32 %v1778, %v2038
        %v2040 = vpop.f32.mrf.mxu0
        %2041 = vmatprep.mubr.f32.mxu0 0.0
        %v2042 = vand.u32 %v294, 4294901760
        %2043 = vmatmul.mubr.f32.gmra.mxu0 %v2042
        %v2044 = vpop.f32.mrf.mxu0
        %v2045 = vadd.f32 %v1784, %v2044
        %v2046 = vpop.f32.mrf.mxu0
        %2047 = vmatprep.mubr.f32.mxu0 0.0
        %v2048 = vand.u32 %v297, 4294901760
        %2049 = vmatmul.mubr.f32.gmra.mxu0 %v2048
        %v2050 = vpop.f32.mrf.mxu0
        %v2051 = vadd.f32 %v1790, %v2050
        %v2052 = vpop.f32.mrf.mxu0
        %2053 = vmatprep.mubr.f32.mxu0 0.0
        %v2054 = vand.u32 %v300, 4294901760
        %2055 = vmatmul.mubr.f32.gmra.mxu0 %v2054
        %v2056 = vpop.f32.mrf.mxu0
        %v2057 = vadd.f32 %v1796, %v2056
        %v2058 = vpop.f32.mrf.mxu0
        %2059 = vmatprep.mubr.f32.mxu0 0.0
        %v2060 = vand.u32 %v303, 4294901760
        %2061 = vmatmul.mubr.f32.gmra.mxu0 %v2060
        %v2062 = vpop.f32.mrf.mxu0
        %v2063 = vadd.f32 %v1802, %v2062
        %v2064 = vpop.f32.mrf.mxu0
        %2065 = vmatprep.mubr.f32.mxu0 0.0
        %v2066 = vand.u32 %v306, 4294901760
        %2067 = vmatmul.mubr.f32.gmra.mxu0 %v2066
        %v2068 = vpop.f32.mrf.mxu0
        %v2069 = vadd.f32 %v1808, %v2068
        %v2070 = vpop.f32.mrf.mxu0
        %2071 = vmatprep.mubr.f32.mxu0 0.0
        %v2072 = vand.u32 %v309, 4294901760
        %2073 = vmatmul.mubr.f32.gmra.mxu0 %v2072
        %v2074 = vpop.f32.mrf.mxu0
        %v2075 = vadd.f32 %v1814, %v2074
        %v2076 = vpop.f32.mrf.mxu0
        %2077 = vmatprep.mubr.f32.mxu0 0.0
        %v2078 = vand.u32 %v312, 4294901760
        %2079 = vmatmul.mubr.f32.gmra.mxu0 %v2078
        %v2080 = vpop.f32.mrf.mxu0
        %v2081 = vadd.f32 %v1820, %v2080
        %v2082 = vpop.f32.mrf.mxu0
        %2083 = vmatprep.mubr.f32.mxu0 0.0
        %v2084 = vand.u32 %v315, 4294901760
        %2085 = vmatmul.mubr.f32.gmra.mxu0 %v2084
        %v2086 = vpop.f32.mrf.mxu0
        %v2087 = vadd.f32 %v1826, %v2086
        %v2088 = vpop.f32.mrf.mxu0
        %2089 = vmatprep.mubr.f32.mxu0 0.0
        %v2090 = vand.u32 %v318, 4294901760
        %2091 = vmatmul.mubr.f32.gmra.mxu0 %v2090
        %v2092 = vpop.f32.mrf.mxu0
        %v2093 = vadd.f32 %v1832, %v2092
        %v2094 = vpop.f32.mrf.mxu0
        %2095 = vmatprep.mubr.f32.mxu0 0.0
        %v2096 = vand.u32 %v321, 4294901760
        %2097 = vmatmul.mubr.f32.gmra.mxu0 %v2096
        %v2098 = vpop.f32.mrf.mxu0
        %v2099 = vadd.f32 %v1838, %v2098
        %v2100 = vpop.f32.mrf.mxu0
        %2101 = vmatprep.mubr.f32.mxu0 0.0
        %v2102 = vand.u32 %v324, 4294901760
        %2103 = vmatmul.mubr.f32.gmra.mxu0 %v2102
        %v2104 = vpop.f32.mrf.mxu0
        %v2105 = vadd.f32 %v1844, %v2104
        %v2106 = vpop.f32.mrf.mxu0
        %2107 = vmatprep.mubr.f32.mxu0 0.0
        %v2108 = vand.u32 %v327, 4294901760
        %2109 = vmatmul.mubr.f32.gmra.mxu0 %v2108
        %v2110 = vpop.f32.mrf.mxu0
        %v2111 = vadd.f32 %v1850, %v2110
        %v2112 = vpop.f32.mrf.mxu0
        %2113 = vmatprep.mubr.f32.mxu0 0.0
        %v2114 = vand.u32 %v330, 4294901760
        %2115 = vmatmul.mubr.f32.gmra.mxu0 %v2114
        %v2116 = vpop.f32.mrf.mxu0
        %v2117 = vadd.f32 %v1856, %v2116
        %v2118 = vpop.f32.mrf.mxu0
        %2119 = vmatprep.mubr.f32.mxu0 0.0
        %v2120 = vand.u32 %v333, 4294901760
        %2121 = vmatmul.mubr.f32.gmra.mxu0 %v2120
        %v2122 = vpop.f32.mrf.mxu0
        %v2123 = vadd.f32 %v1862, %v2122
        %v2124 = vpop.f32.mrf.mxu0
        %2125 = vmatprep.mubr.f32.mxu0 0.0
        %v2126 = vand.u32 %v336, 4294901760
        %2127 = vmatmul.mubr.f32.gmra.mxu0 %v2126
        %v2128 = vpop.f32.mrf.mxu0
        %v2129 = vadd.f32 %v1868, %v2128
        %v2130 = vpop.f32.mrf.mxu0
        %2131 = vmatprep.mubr.f32.mxu0 0.0
        %v2132 = vand.u32 %v339, 4294901760
        %2133 = vmatmul.mubr.f32.gmra.mxu0 %v2132
        %v2134 = vpop.f32.mrf.mxu0
        %v2135 = vadd.f32 %v1874, %v2134
        %v2136 = vpop.f32.mrf.mxu0
        %2137 = vmatprep.mubr.f32.mxu0 0.0
        %v2138 = vand.u32 %v342, 4294901760
        %2139 = vmatmul.mubr.f32.gmra.mxu0 %v2138
        %v2140 = vpop.f32.mrf.mxu0
        %v2141 = vadd.f32 %v1880, %v2140
        %v2142 = vpop.f32.mrf.mxu0
        %2143 = vmatprep.mubr.f32.mxu0 0.0
        %v2144 = vand.u32 %v345, 4294901760
        %2145 = vmatmul.mubr.f32.gmra.mxu0 %v2144
        %v2146 = vpop.f32.mrf.mxu0
        %v2147 = vadd.f32 %v1886, %v2146
        %v2148 = vpop.f32.mrf.mxu0
        %2149 = vmatprep.mubr.f32.mxu0 0.0
        %v2150 = vand.u32 %v348, 4294901760
        %2151 = vmatmul.mubr.f32.gmra.mxu0 %v2150
        %v2152 = vpop.f32.mrf.mxu0
        %v2153 = vadd.f32 %v1892, %v2152
        %v2154 = vpop.f32.mrf.mxu0
        %2155 = vmatprep.mubr.f32.mxu0 0.0
        %v2156 = vand.u32 %v351, 4294901760
        %2157 = vmatmul.mubr.f32.gmra.mxu0 %v2156
        %v2158 = vpop.f32.mrf.mxu0
        %v2159 = vadd.f32 %v1898, %v2158
        %v2160 = vpop.f32.mrf.mxu0
        %2161 = vmatprep.mubr.f32.mxu0 0.0
        %v2162 = vand.u32 %v354, 4294901760
        %2163 = vmatmul.mubr.f32.gmra.mxu0 %v2162
        %v2164 = vpop.f32.mrf.mxu0
        %v2165 = vadd.f32 %v1904, %v2164
        %v2166 = vpop.f32.mrf.mxu0
        %2167 = vmatprep.mubr.f32.mxu0 0.0
        %v2168 = vand.u32 %v357, 4294901760
        %2169 = vmatmul.mubr.f32.gmra.mxu0 %v2168
        %v2170 = vpop.f32.mrf.mxu0
        %v2171 = vadd.f32 %v1910, %v2170
        %v2172 = vpop.f32.mrf.mxu0
        %2173 = vmatprep.mubr.f32.mxu0 0.0
        %v2174 = vand.u32 %v360, 4294901760
        %2175 = vmatmul.mubr.f32.gmra.mxu0 %v2174
        %v2176 = vpop.f32.mrf.mxu0
        %v2177 = vadd.f32 %v1916, %v2176
        %v2178 = vpop.f32.mrf.mxu0
        %2179 = vdwg.mxu0
        %v2180 = vld [vmem:[%s1] sm:$0xff]
        %v2181 = vld [vmem:[%s1 + $0x8] sm:$0xff]
        %v2182 = vld [vmem:[%s1 + $0x10] sm:$0xff]
        %v2183 = vld [vmem:[%s1 + $0x18] sm:$0xff]
        %v2184 = vld [vmem:[%s1 + $0x20] sm:$0xff]
        %v2185 = vld [vmem:[%s1 + $0x28] sm:$0xff]
        %v2186 = vld [vmem:[%s1 + $0x30] sm:$0xff]
        %v2187 = vld [vmem:[%s1 + $0x38] sm:$0xff]
        %v2188 = vadd.f32 %v1991, %v2180
        %v2189 = vadd.f32 %v1997, %v2181
        %v2190 = vadd.f32 %v2003, %v2182
        %v2191 = vadd.f32 %v2009, %v2183
        %v2192 = vadd.f32 %v2015, %v2184
        %v2193 = vadd.f32 %v2021, %v2185
        %v2194 = vadd.f32 %v2027, %v2186
        %v2195 = vadd.f32 %v2033, %v2187
        %v2196 = vadd.f32 %v2039, %v2180
        %v2197 = vadd.f32 %v2045, %v2181
        %v2198 = vadd.f32 %v2051, %v2182
        %v2199 = vadd.f32 %v2057, %v2183
        %v2200 = vadd.f32 %v2063, %v2184
        %v2201 = vadd.f32 %v2069, %v2185
        %v2202 = vadd.f32 %v2075, %v2186
        %v2203 = vadd.f32 %v2081, %v2187
        %v2204 = vadd.f32 %v2087, %v2180
        %v2205 = vadd.f32 %v2093, %v2181
        %v2206 = vadd.f32 %v2099, %v2182
        %v2207 = vadd.f32 %v2105, %v2183
        %v2208 = vadd.f32 %v2111, %v2184
        %v2209 = vadd.f32 %v2117, %v2185
        %v2210 = vadd.f32 %v2123, %v2186
        %v2211 = vadd.f32 %v2129, %v2187
        %v2212 = vadd.f32 %v2135, %v2180
        %v2213 = vadd.f32 %v2141, %v2181
        %v2214 = vadd.f32 %v2147, %v2182
        %v2215 = vadd.f32 %v2153, %v2183
        %v2216 = vadd.f32 %v2159, %v2184
        %v2217 = vadd.f32 %v2165, %v2185
        %v2218 = vadd.f32 %v2171, %v2186
        %v2219 = vadd.f32 %v2177, %v2187
        %2220 = vadd.xlane.f32.xlu0 %v2188
        %v2221 = vpop.xlane.xlu0 %2220
        %2222 = vadd.xlane.f32.xlu0 %v2189
        %v2223 = vpop.xlane.xlu0 %2222
        %2224 = vadd.xlane.f32.xlu0 %v2190
        %v2225 = vpop.xlane.xlu0 %2224
        %2226 = vadd.xlane.f32.xlu0 %v2191
        %v2227 = vpop.xlane.xlu0 %2226
        %2228 = vadd.xlane.f32.xlu0 %v2192
        %v2229 = vpop.xlane.xlu0 %2228
        %2230 = vadd.xlane.f32.xlu0 %v2193
        %v2231 = vpop.xlane.xlu0 %2230
        %2232 = vadd.xlane.f32.xlu0 %v2194
        %v2233 = vpop.xlane.xlu0 %2232
        %2234 = vadd.xlane.f32.xlu0 %v2195
        %v2235 = vpop.xlane.xlu0 %2234
        %2236 = vadd.xlane.f32.xlu0 %v2196
        %v2237 = vpop.xlane.xlu0 %2236
        %2238 = vadd.xlane.f32.xlu0 %v2197
        %v2239 = vpop.xlane.xlu0 %2238
        %2240 = vadd.xlane.f32.xlu0 %v2198
        %v2241 = vpop.xlane.xlu0 %2240
        %2242 = vadd.xlane.f32.xlu0 %v2199
        %v2243 = vpop.xlane.xlu0 %2242
        %2244 = vadd.xlane.f32.xlu0 %v2200
        %v2245 = vpop.xlane.xlu0 %2244
        %2246 = vadd.xlane.f32.xlu0 %v2201
        %v2247 = vpop.xlane.xlu0 %2246
        %2248 = vadd.xlane.f32.xlu0 %v2202
        %v2249 = vpop.xlane.xlu0 %2248
        %2250 = vadd.xlane.f32.xlu0 %v2203
        %v2251 = vpop.xlane.xlu0 %2250
        %2252 = vadd.xlane.f32.xlu0 %v2204
        %v2253 = vpop.xlane.xlu0 %2252
        %2254 = vadd.xlane.f32.xlu0 %v2205
        %v2255 = vpop.xlane.xlu0 %2254
        %2256 = vadd.xlane.f32.xlu0 %v2206
        %v2257 = vpop.xlane.xlu0 %2256
        %2258 = vadd.xlane.f32.xlu0 %v2207
        %v2259 = vpop.xlane.xlu0 %2258
        %2260 = vadd.xlane.f32.xlu0 %v2208
        %v2261 = vpop.xlane.xlu0 %2260
        %2262 = vadd.xlane.f32.xlu0 %v2209
        %v2263 = vpop.xlane.xlu0 %2262
        %2264 = vadd.xlane.f32.xlu0 %v2210
        %v2265 = vpop.xlane.xlu0 %2264
        %2266 = vadd.xlane.f32.xlu0 %v2211
        %v2267 = vpop.xlane.xlu0 %2266
        %2268 = vadd.xlane.f32.xlu0 %v2212
        %v2269 = vpop.xlane.xlu0 %2268
        %2270 = vadd.xlane.f32.xlu0 %v2213
        %v2271 = vpop.xlane.xlu0 %2270
        %2272 = vadd.xlane.f32.xlu0 %v2214
        %v2273 = vpop.xlane.xlu0 %2272
        %2274 = vadd.xlane.f32.xlu0 %v2215
        %v2275 = vpop.xlane.xlu0 %2274
        %2276 = vadd.xlane.f32.xlu0 %v2216
        %v2277 = vpop.xlane.xlu0 %2276
        %2278 = vadd.xlane.f32.xlu0 %v2217
        %v2279 = vpop.xlane.xlu0 %2278
        %2280 = vadd.xlane.f32.xlu0 %v2218
        %v2281 = vpop.xlane.xlu0 %2280
        %2282 = vadd.xlane.f32.xlu0 %v2219
        %v2283 = vpop.xlane.xlu0 %2282
        %v2284 = vrcp.pop 128.0
        %v2285 = vmul.f32 %v2221, %v2284
        %v2286 = vmul.f32 %v2223, %v2284
        %v2287 = vmul.f32 %v2225, %v2284
        %v2288 = vmul.f32 %v2227, %v2284
        %v2289 = vmul.f32 %v2229, %v2284
        %v2290 = vmul.f32 %v2231, %v2284
        %v2291 = vmul.f32 %v2233, %v2284
        %v2292 = vmul.f32 %v2235, %v2284
        %v2293 = vmul.f32 %v2237, %v2284
        %v2294 = vmul.f32 %v2239, %v2284
        %v2295 = vmul.f32 %v2241, %v2284
        %v2296 = vmul.f32 %v2243, %v2284
        %v2297 = vmul.f32 %v2245, %v2284
        %v2298 = vmul.f32 %v2247, %v2284
        %v2299 = vmul.f32 %v2249, %v2284
        %v2300 = vmul.f32 %v2251, %v2284
        %v2301 = vmul.f32 %v2253, %v2284
        %v2302 = vmul.f32 %v2255, %v2284
        %v2303 = vmul.f32 %v2257, %v2284
        %v2304 = vmul.f32 %v2259, %v2284
        %v2305 = vmul.f32 %v2261, %v2284
        %v2306 = vmul.f32 %v2263, %v2284
        %v2307 = vmul.f32 %v2265, %v2284
        %v2308 = vmul.f32 %v2267, %v2284
        %v2309 = vmul.f32 %v2269, %v2284
        %v2310 = vmul.f32 %v2271, %v2284
        %v2311 = vmul.f32 %v2273, %v2284
        %v2312 = vmul.f32 %v2275, %v2284
        %v2313 = vmul.f32 %v2277, %v2284
        %v2314 = vmul.f32 %v2279, %v2284
        %v2315 = vmul.f32 %v2281, %v2284
        %v2316 = vmul.f32 %v2283, %v2284
        %v2317 = vsub.f32 %v2188, %v2285
        %v2318 = vsub.f32 %v2189, %v2286
        %v2319 = vsub.f32 %v2190, %v2287
        %v2320 = vsub.f32 %v2191, %v2288
        %v2321 = vsub.f32 %v2192, %v2289
        %v2322 = vsub.f32 %v2193, %v2290
        %v2323 = vsub.f32 %v2194, %v2291
        %v2324 = vsub.f32 %v2195, %v2292
        %v2325 = vsub.f32 %v2196, %v2293
        %v2326 = vsub.f32 %v2197, %v2294
        %v2327 = vsub.f32 %v2198, %v2295
        %v2328 = vsub.f32 %v2199, %v2296
        %v2329 = vsub.f32 %v2200, %v2297
        %v2330 = vsub.f32 %v2201, %v2298
        %v2331 = vsub.f32 %v2202, %v2299
        %v2332 = vsub.f32 %v2203, %v2300
        %v2333 = vsub.f32 %v2204, %v2301
        %v2334 = vsub.f32 %v2205, %v2302
        %v2335 = vsub.f32 %v2206, %v2303
        %v2336 = vsub.f32 %v2207, %v2304
        %v2337 = vsub.f32 %v2208, %v2305
        %v2338 = vsub.f32 %v2209, %v2306
        %v2339 = vsub.f32 %v2210, %v2307
        %v2340 = vsub.f32 %v2211, %v2308
        %v2341 = vsub.f32 %v2212, %v2309
        %v2342 = vsub.f32 %v2213, %v2310
        %v2343 = vsub.f32 %v2214, %v2311
        %v2344 = vsub.f32 %v2215, %v2312
        %v2345 = vsub.f32 %v2216, %v2313
        %v2346 = vsub.f32 %v2217, %v2314
        %v2347 = vsub.f32 %v2218, %v2315
        %v2348 = vsub.f32 %v2219, %v2316
        %v2349 = vmul.f32 %v2317, %v2317
        %v2350 = vmul.f32 %v2318, %v2318
        %v2351 = vmul.f32 %v2319, %v2319
        %v2352 = vmul.f32 %v2320, %v2320
        %v2353 = vmul.f32 %v2321, %v2321
        %v2354 = vmul.f32 %v2322, %v2322
        %v2355 = vmul.f32 %v2323, %v2323
        %v2356 = vmul.f32 %v2324, %v2324
        %v2357 = vmul.f32 %v2325, %v2325
        %v2358 = vmul.f32 %v2326, %v2326
        %v2359 = vmul.f32 %v2327, %v2327
        %v2360 = vmul.f32 %v2328, %v2328
        %v2361 = vmul.f32 %v2329, %v2329
        %v2362 = vmul.f32 %v2330, %v2330
        %v2363 = vmul.f32 %v2331, %v2331
        %v2364 = vmul.f32 %v2332, %v2332
        %v2365 = vmul.f32 %v2333, %v2333
        %v2366 = vmul.f32 %v2334, %v2334
        %v2367 = vmul.f32 %v2335, %v2335
        %v2368 = vmul.f32 %v2336, %v2336
        %v2369 = vmul.f32 %v2337, %v2337
        %v2370 = vmul.f32 %v2338, %v2338
        %v2371 = vmul.f32 %v2339, %v2339
        %v2372 = vmul.f32 %v2340, %v2340
        %v2373 = vmul.f32 %v2341, %v2341
        %v2374 = vmul.f32 %v2342, %v2342
        %v2375 = vmul.f32 %v2343, %v2343
        %v2376 = vmul.f32 %v2344, %v2344
        %v2377 = vmul.f32 %v2345, %v2345
        %v2378 = vmul.f32 %v2346, %v2346
        %v2379 = vmul.f32 %v2347, %v2347
        %v2380 = vmul.f32 %v2348, %v2348
        %2381 = vadd.xlane.f32.xlu0 %v2349
        %v2382 = vpop.xlane.xlu0 %2381
        %2383 = vadd.xlane.f32.xlu0 %v2350
        %v2384 = vpop.xlane.xlu0 %2383
        %2385 = vadd.xlane.f32.xlu0 %v2351
        %v2386 = vpop.xlane.xlu0 %2385
        %2387 = vadd.xlane.f32.xlu0 %v2352
        %v2388 = vpop.xlane.xlu0 %2387
        %2389 = vadd.xlane.f32.xlu0 %v2353
        %v2390 = vpop.xlane.xlu0 %2389
        %2391 = vadd.xlane.f32.xlu0 %v2354
        %v2392 = vpop.xlane.xlu0 %2391
        %2393 = vadd.xlane.f32.xlu0 %v2355
        %v2394 = vpop.xlane.xlu0 %2393
        %2395 = vadd.xlane.f32.xlu0 %v2356
        %v2396 = vpop.xlane.xlu0 %2395
        %2397 = vadd.xlane.f32.xlu0 %v2357
        %v2398 = vpop.xlane.xlu0 %2397
        %2399 = vadd.xlane.f32.xlu0 %v2358
        %v2400 = vpop.xlane.xlu0 %2399
        %2401 = vadd.xlane.f32.xlu0 %v2359
        %v2402 = vpop.xlane.xlu0 %2401
        %2403 = vadd.xlane.f32.xlu0 %v2360
        %v2404 = vpop.xlane.xlu0 %2403
        %2405 = vadd.xlane.f32.xlu0 %v2361
        %v2406 = vpop.xlane.xlu0 %2405
        %2407 = vadd.xlane.f32.xlu0 %v2362
        %v2408 = vpop.xlane.xlu0 %2407
        %2409 = vadd.xlane.f32.xlu0 %v2363
        %v2410 = vpop.xlane.xlu0 %2409
        %2411 = vadd.xlane.f32.xlu0 %v2364
        %v2412 = vpop.xlane.xlu0 %2411
        %2413 = vadd.xlane.f32.xlu0 %v2365
        %v2414 = vpop.xlane.xlu0 %2413
        %2415 = vadd.xlane.f32.xlu0 %v2366
        %v2416 = vpop.xlane.xlu0 %2415
        %2417 = vadd.xlane.f32.xlu0 %v2367
        %v2418 = vpop.xlane.xlu0 %2417
        %2419 = vadd.xlane.f32.xlu0 %v2368
        %v2420 = vpop.xlane.xlu0 %2419
        %2421 = vadd.xlane.f32.xlu0 %v2369
        %v2422 = vpop.xlane.xlu0 %2421
        %2423 = vadd.xlane.f32.xlu0 %v2370
        %v2424 = vpop.xlane.xlu0 %2423
        %2425 = vadd.xlane.f32.xlu0 %v2371
        %v2426 = vpop.xlane.xlu0 %2425
        %2427 = vadd.xlane.f32.xlu0 %v2372
        %v2428 = vpop.xlane.xlu0 %2427
        %2429 = vadd.xlane.f32.xlu0 %v2373
        %v2430 = vpop.xlane.xlu0 %2429
        %2431 = vadd.xlane.f32.xlu0 %v2374
        %v2432 = vpop.xlane.xlu0 %2431
        %2433 = vadd.xlane.f32.xlu0 %v2375
        %v2434 = vpop.xlane.xlu0 %2433
        %2435 = vadd.xlane.f32.xlu0 %v2376
        %v2436 = vpop.xlane.xlu0 %2435
        %2437 = vadd.xlane.f32.xlu0 %v2377
        %v2438 = vpop.xlane.xlu0 %2437
        %2439 = vadd.xlane.f32.xlu0 %v2378
        %v2440 = vpop.xlane.xlu0 %2439
        %2441 = vadd.xlane.f32.xlu0 %v2379
        %v2442 = vpop.xlane.xlu0 %2441
        %2443 = vadd.xlane.f32.xlu0 %v2380
        %v2444 = vpop.xlane.xlu0 %2443
        %v2445 = vmul.f32 %v2382, %v2284
        %v2446 = vmul.f32 %v2384, %v2284
        %v2447 = vmul.f32 %v2386, %v2284
        %v2448 = vmul.f32 %v2388, %v2284
        %v2449 = vmul.f32 %v2390, %v2284
        %v2450 = vmul.f32 %v2392, %v2284
        %v2451 = vmul.f32 %v2394, %v2284
        %v2452 = vmul.f32 %v2396, %v2284
        %v2453 = vmul.f32 %v2398, %v2284
        %v2454 = vmul.f32 %v2400, %v2284
        %v2455 = vmul.f32 %v2402, %v2284
        %v2456 = vmul.f32 %v2404, %v2284
        %v2457 = vmul.f32 %v2406, %v2284
        %v2458 = vmul.f32 %v2408, %v2284
        %v2459 = vmul.f32 %v2410, %v2284
        %v2460 = vmul.f32 %v2412, %v2284
        %v2461 = vmul.f32 %v2414, %v2284
        %v2462 = vmul.f32 %v2416, %v2284
        %v2463 = vmul.f32 %v2418, %v2284
        %v2464 = vmul.f32 %v2420, %v2284
        %v2465 = vmul.f32 %v2422, %v2284
        %v2466 = vmul.f32 %v2424, %v2284
        %v2467 = vmul.f32 %v2426, %v2284
        %v2468 = vmul.f32 %v2428, %v2284
        %v2469 = vmul.f32 %v2430, %v2284
        %v2470 = vmul.f32 %v2432, %v2284
        %v2471 = vmul.f32 %v2434, %v2284
        %v2472 = vmul.f32 %v2436, %v2284
        %v2473 = vmul.f32 %v2438, %v2284
        %v2474 = vmul.f32 %v2440, %v2284
        %v2475 = vmul.f32 %v2442, %v2284
        %v2476 = vmul.f32 %v2444, %v2284
        %v2477 = vadd.f32 %v2445, 1e-05
        %v2478 = vadd.f32 %v2446, 1e-05
        %v2479 = vadd.f32 %v2447, 1e-05
        %v2480 = vadd.f32 %v2448, 1e-05
        %v2481 = vadd.f32 %v2449, 1e-05
        %v2482 = vadd.f32 %v2450, 1e-05
        %v2483 = vadd.f32 %v2451, 1e-05
        %v2484 = vadd.f32 %v2452, 1e-05
        %v2485 = vadd.f32 %v2453, 1e-05
        %v2486 = vadd.f32 %v2454, 1e-05
        %v2487 = vadd.f32 %v2455, 1e-05
        %v2488 = vadd.f32 %v2456, 1e-05
        %v2489 = vadd.f32 %v2457, 1e-05
        %v2490 = vadd.f32 %v2458, 1e-05
        %v2491 = vadd.f32 %v2459, 1e-05
        %v2492 = vadd.f32 %v2460, 1e-05
        %v2493 = vadd.f32 %v2461, 1e-05
        %v2494 = vadd.f32 %v2462, 1e-05
        %v2495 = vadd.f32 %v2463, 1e-05
        %v2496 = vadd.f32 %v2464, 1e-05
        %v2497 = vadd.f32 %v2465, 1e-05
        %v2498 = vadd.f32 %v2466, 1e-05
        %v2499 = vadd.f32 %v2467, 1e-05
        %v2500 = vadd.f32 %v2468, 1e-05
        %v2501 = vadd.f32 %v2469, 1e-05
        %v2502 = vadd.f32 %v2470, 1e-05
        %v2503 = vadd.f32 %v2471, 1e-05
        %v2504 = vadd.f32 %v2472, 1e-05
        %v2505 = vadd.f32 %v2473, 1e-05
        %v2506 = vadd.f32 %v2474, 1e-05
        %v2507 = vadd.f32 %v2475, 1e-05
        %v2508 = vadd.f32 %v2476, 1e-05
        %v2509 = vrsqrt.pop %v2477
        %v2510 = vrsqrt.pop %v2478
        %v2511 = vrsqrt.pop %v2479
        %v2512 = vrsqrt.pop %v2480
        %v2513 = vrsqrt.pop %v2481
        %v2514 = vrsqrt.pop %v2482
        %v2515 = vrsqrt.pop %v2483
        %v2516 = vrsqrt.pop %v2484
        %v2517 = vrsqrt.pop %v2485
        %v2518 = vrsqrt.pop %v2486
        %v2519 = vrsqrt.pop %v2487
        %v2520 = vrsqrt.pop %v2488
        %v2521 = vrsqrt.pop %v2489
        %v2522 = vrsqrt.pop %v2490
        %v2523 = vrsqrt.pop %v2491
        %v2524 = vrsqrt.pop %v2492
        %v2525 = vrsqrt.pop %v2493
        %v2526 = vrsqrt.pop %v2494
        %v2527 = vrsqrt.pop %v2495
        %v2528 = vrsqrt.pop %v2496
        %v2529 = vrsqrt.pop %v2497
        %v2530 = vrsqrt.pop %v2498
        %v2531 = vrsqrt.pop %v2499
        %v2532 = vrsqrt.pop %v2500
        %v2533 = vrsqrt.pop %v2501
        %v2534 = vrsqrt.pop %v2502
        %v2535 = vrsqrt.pop %v2503
        %v2536 = vrsqrt.pop %v2504
        %v2537 = vrsqrt.pop %v2505
        %v2538 = vrsqrt.pop %v2506
        %v2539 = vrsqrt.pop %v2507
        %v2540 = vrsqrt.pop %v2508
        %v2541 = vld [vmem:[%s3] sm:$0x1]
        %v2543 = vlaneseq
        %v2544 = vshrl.u32 %v2543, 7
        %v2545 = vsub.s32 0, %v2544
        %v2546 = vrot.slane %v2541, %v2545
        %v2548 = vmul.f32 %v2509, %v2546
        %v2549 = vmul.f32 %v2510, %v2546
        %v2550 = vmul.f32 %v2511, %v2546
        %v2551 = vmul.f32 %v2512, %v2546
        %v2552 = vmul.f32 %v2513, %v2546
        %v2553 = vmul.f32 %v2514, %v2546
        %v2554 = vmul.f32 %v2515, %v2546
        %v2555 = vmul.f32 %v2516, %v2546
        %v2556 = vmul.f32 %v2517, %v2546
        %v2557 = vmul.f32 %v2518, %v2546
        %v2558 = vmul.f32 %v2519, %v2546
        %v2559 = vmul.f32 %v2520, %v2546
        %v2560 = vmul.f32 %v2521, %v2546
        %v2561 = vmul.f32 %v2522, %v2546
        %v2562 = vmul.f32 %v2523, %v2546
        %v2563 = vmul.f32 %v2524, %v2546
        %v2564 = vmul.f32 %v2525, %v2546
        %v2565 = vmul.f32 %v2526, %v2546
        %v2566 = vmul.f32 %v2527, %v2546
        %v2567 = vmul.f32 %v2528, %v2546
        %v2568 = vmul.f32 %v2529, %v2546
        %v2569 = vmul.f32 %v2530, %v2546
        %v2570 = vmul.f32 %v2531, %v2546
        %v2571 = vmul.f32 %v2532, %v2546
        %v2572 = vmul.f32 %v2533, %v2546
        %v2573 = vmul.f32 %v2534, %v2546
        %v2574 = vmul.f32 %v2535, %v2546
        %v2575 = vmul.f32 %v2536, %v2546
        %v2576 = vmul.f32 %v2537, %v2546
        %v2577 = vmul.f32 %v2538, %v2546
        %v2578 = vmul.f32 %v2539, %v2546
        %v2579 = vmul.f32 %v2540, %v2546
        %v2580 = vld [vmem:[%s4] sm:$0x1]
        %v2581 = vmul.f32 %v2285, %v2548
        %v2582 = vmul.f32 %v2286, %v2549
        %v2583 = vmul.f32 %v2287, %v2550
        %v2584 = vmul.f32 %v2288, %v2551
        %v2585 = vmul.f32 %v2289, %v2552
        %v2586 = vmul.f32 %v2290, %v2553
        %v2587 = vmul.f32 %v2291, %v2554
        %v2588 = vmul.f32 %v2292, %v2555
        %v2589 = vmul.f32 %v2293, %v2556
        %v2590 = vmul.f32 %v2294, %v2557
        %v2591 = vmul.f32 %v2295, %v2558
        %v2592 = vmul.f32 %v2296, %v2559
        %v2593 = vmul.f32 %v2297, %v2560
        %v2594 = vmul.f32 %v2298, %v2561
        %v2595 = vmul.f32 %v2299, %v2562
        %v2596 = vmul.f32 %v2300, %v2563
        %v2597 = vmul.f32 %v2301, %v2564
        %v2598 = vmul.f32 %v2302, %v2565
        %v2599 = vmul.f32 %v2303, %v2566
        %v2600 = vmul.f32 %v2304, %v2567
        %v2601 = vmul.f32 %v2305, %v2568
        %v2602 = vmul.f32 %v2306, %v2569
        %v2603 = vmul.f32 %v2307, %v2570
        %v2604 = vmul.f32 %v2308, %v2571
        %v2605 = vmul.f32 %v2309, %v2572
        %v2606 = vmul.f32 %v2310, %v2573
        %v2607 = vmul.f32 %v2311, %v2574
        %v2608 = vmul.f32 %v2312, %v2575
        %v2609 = vmul.f32 %v2313, %v2576
        %v2610 = vmul.f32 %v2314, %v2577
        %v2611 = vmul.f32 %v2315, %v2578
        %v2612 = vmul.f32 %v2316, %v2579
        %v2614 = vlaneseq
        %v2615 = vshrl.u32 %v2614, 7
        %v2616 = vsub.s32 0, %v2615
        %v2617 = vrot.slane %v2580, %v2616
        %v2619 = vsub.f32 %v2617, %v2581
        %v2620 = vsub.f32 %v2617, %v2582
        %v2621 = vsub.f32 %v2617, %v2583
        %v2622 = vsub.f32 %v2617, %v2584
        %v2623 = vsub.f32 %v2617, %v2585
        %v2624 = vsub.f32 %v2617, %v2586
        %v2625 = vsub.f32 %v2617, %v2587
        %v2626 = vsub.f32 %v2617, %v2588
        %v2627 = vsub.f32 %v2617, %v2589
        %v2628 = vsub.f32 %v2617, %v2590
        %v2629 = vsub.f32 %v2617, %v2591
        %v2630 = vsub.f32 %v2617, %v2592
        %v2631 = vsub.f32 %v2617, %v2593
        %v2632 = vsub.f32 %v2617, %v2594
        %v2633 = vsub.f32 %v2617, %v2595
        %v2634 = vsub.f32 %v2617, %v2596
        %v2635 = vsub.f32 %v2617, %v2597
        %v2636 = vsub.f32 %v2617, %v2598
        %v2637 = vsub.f32 %v2617, %v2599
        %v2638 = vsub.f32 %v2617, %v2600
        %v2639 = vsub.f32 %v2617, %v2601
        %v2640 = vsub.f32 %v2617, %v2602
        %v2641 = vsub.f32 %v2617, %v2603
        %v2642 = vsub.f32 %v2617, %v2604
        %v2643 = vsub.f32 %v2617, %v2605
        %v2644 = vsub.f32 %v2617, %v2606
        %v2645 = vsub.f32 %v2617, %v2607
        %v2646 = vsub.f32 %v2617, %v2608
        %v2647 = vsub.f32 %v2617, %v2609
        %v2648 = vsub.f32 %v2617, %v2610
        %v2649 = vsub.f32 %v2617, %v2611
        %v2650 = vsub.f32 %v2617, %v2612
        %v2651 = vmul.f32 %v2188, %v2548
        %v2652 = vmul.f32 %v2189, %v2549
        %v2653 = vmul.f32 %v2190, %v2550
        %v2654 = vmul.f32 %v2191, %v2551
        %v2655 = vmul.f32 %v2192, %v2552
        %v2656 = vmul.f32 %v2193, %v2553
        %v2657 = vmul.f32 %v2194, %v2554
        %v2658 = vmul.f32 %v2195, %v2555
        %v2659 = vmul.f32 %v2196, %v2556
        %v2660 = vmul.f32 %v2197, %v2557
        %v2661 = vmul.f32 %v2198, %v2558
        %v2662 = vmul.f32 %v2199, %v2559
        %v2663 = vmul.f32 %v2200, %v2560
        %v2664 = vmul.f32 %v2201, %v2561
        %v2665 = vmul.f32 %v2202, %v2562
        %v2666 = vmul.f32 %v2203, %v2563
        %v2667 = vmul.f32 %v2204, %v2564
        %v2668 = vmul.f32 %v2205, %v2565
        %v2669 = vmul.f32 %v2206, %v2566
        %v2670 = vmul.f32 %v2207, %v2567
        %v2671 = vmul.f32 %v2208, %v2568
        %v2672 = vmul.f32 %v2209, %v2569
        %v2673 = vmul.f32 %v2210, %v2570
        %v2674 = vmul.f32 %v2211, %v2571
        %v2675 = vmul.f32 %v2212, %v2572
        %v2676 = vmul.f32 %v2213, %v2573
        %v2677 = vmul.f32 %v2214, %v2574
        %v2678 = vmul.f32 %v2215, %v2575
        %v2679 = vmul.f32 %v2216, %v2576
        %v2680 = vmul.f32 %v2217, %v2577
        %v2681 = vmul.f32 %v2218, %v2578
        %v2682 = vmul.f32 %v2219, %v2579
        %v2683 = vadd.f32 %v2651, %v2619
        %v2684 = vadd.f32 %v2652, %v2620
        %v2685 = vadd.f32 %v2653, %v2621
        %v2686 = vadd.f32 %v2654, %v2622
        %v2687 = vadd.f32 %v2655, %v2623
        %v2688 = vadd.f32 %v2656, %v2624
        %v2689 = vadd.f32 %v2657, %v2625
        %v2690 = vadd.f32 %v2658, %v2626
        %v2691 = vadd.f32 %v2659, %v2627
        %v2692 = vadd.f32 %v2660, %v2628
        %v2693 = vadd.f32 %v2661, %v2629
        %v2694 = vadd.f32 %v2662, %v2630
        %v2695 = vadd.f32 %v2663, %v2631
        %v2696 = vadd.f32 %v2664, %v2632
        %v2697 = vadd.f32 %v2665, %v2633
        %v2698 = vadd.f32 %v2666, %v2634
        %v2699 = vadd.f32 %v2667, %v2635
        %v2700 = vadd.f32 %v2668, %v2636
        %v2701 = vadd.f32 %v2669, %v2637
        %v2702 = vadd.f32 %v2670, %v2638
        %v2703 = vadd.f32 %v2671, %v2639
        %v2704 = vadd.f32 %v2672, %v2640
        %v2705 = vadd.f32 %v2673, %v2641
        %v2706 = vadd.f32 %v2674, %v2642
        %v2707 = vadd.f32 %v2675, %v2643
        %v2708 = vadd.f32 %v2676, %v2644
        %v2709 = vadd.f32 %v2677, %v2645
        %v2710 = vadd.f32 %v2678, %v2646
        %v2711 = vadd.f32 %v2679, %v2647
        %v2712 = vadd.f32 %v2680, %v2648
        %v2713 = vadd.f32 %v2681, %v2649
        %v2714 = vadd.f32 %v2682, %v2650
        %2715 = vst [vmem:[%s220] sm:$0xff] %v2683
        %2716 = vst [vmem:[%s220 + $0x8] sm:$0xff] %v2684
        %2717 = vst [vmem:[%s220 + $0x10] sm:$0xff] %v2685
        %2718 = vst [vmem:[%s220 + $0x18] sm:$0xff] %v2686
        %2719 = vst [vmem:[%s220 + $0x20] sm:$0xff] %v2687
        %2720 = vst [vmem:[%s220 + $0x28] sm:$0xff] %v2688
        %2721 = vst [vmem:[%s220 + $0x30] sm:$0xff] %v2689
        %2722 = vst [vmem:[%s220 + $0x38] sm:$0xff] %v2690
        %2723 = vst [vmem:[%s220 + $0x40] sm:$0xff] %v2691
        %2724 = vst [vmem:[%s220 + $0x48] sm:$0xff] %v2692
        %2725 = vst [vmem:[%s220 + $0x50] sm:$0xff] %v2693
        %2726 = vst [vmem:[%s220 + $0x58] sm:$0xff] %v2694
        %2727 = vst [vmem:[%s220 + $0x60] sm:$0xff] %v2695
        %2728 = vst [vmem:[%s220 + $0x68] sm:$0xff] %v2696
        %2729 = vst [vmem:[%s220 + $0x70] sm:$0xff] %v2697
        %2730 = vst [vmem:[%s220 + $0x78] sm:$0xff] %v2698
        %2731 = vst [vmem:[%s220 + $0x80] sm:$0xff] %v2699
        %2732 = vst [vmem:[%s220 + $0x88] sm:$0xff] %v2700
        %2733 = vst [vmem:[%s220 + $0x90] sm:$0xff] %v2701
        %2734 = vst [vmem:[%s220 + $0x98] sm:$0xff] %v2702
        %2735 = vst [vmem:[%s220 + $0xa0] sm:$0xff] %v2703
        %2736 = vst [vmem:[%s220 + $0xa8] sm:$0xff] %v2704
        %2737 = vst [vmem:[%s220 + $0xb0] sm:$0xff] %v2705
        %2738 = vst [vmem:[%s220 + $0xb8] sm:$0xff] %v2706
        %2739 = vst [vmem:[%s220 + $0xc0] sm:$0xff] %v2707
        %2740 = vst [vmem:[%s220 + $0xc8] sm:$0xff] %v2708
        %2741 = vst [vmem:[%s220 + $0xd0] sm:$0xff] %v2709
        %2742 = vst [vmem:[%s220 + $0xd8] sm:$0xff] %v2710
        %2743 = vst [vmem:[%s220 + $0xe0] sm:$0xff] %v2711
        %2744 = vst [vmem:[%s220 + $0xe8] sm:$0xff] %v2712
        %2745 = vst [vmem:[%s220 + $0xf0] sm:$0xff] %v2713
        %2746 = vst [vmem:[%s220 + $0xf8] sm:$0xff] %v2714
        %s2747 = sand.u32 %s137, 1
        %s2748 = scalar_lea.sflag [#allocation3], %s2747
        %s2749 = sand.u32 %s137, 1
        %s2750 = smul.addr %s2749, 256
        %s2751 = scalar_lea.vmem [#allocation2], %s2750
        // Predicated region
        $region41: #{tpu_custom_call.1} parent=39 // pred_check
          %p2752 = pneg %p147
        $region42: #{tpu_custom_call.1} parent=39 // pred_check_branch
          %2754 = sbr.rel (%p2752) target = $region44
        $region43: #{tpu_custom_call.1} parent=39 // pred_region
          %s2755 = smul.u32 4, %s19
          %s2757 = ssub.s32 4096, 4096
          %2758 = vsyncadd %s2748, %s2757
          %s2759 = smul.addr %s2755, 8
          %s2760 = smul.addr %s2759, 128
          %s2761 = scalar_lea.hbm %s5, %s2760
          %s2762 = sshll.u32 %s2751, 4
          %s2763 = int_to_ptr.vmem [resolvable:$true] %s2762
          %2768 = dma.vmem_to_hbm [thread:$0]  %s2763, 4096, %s2761, %s2748, 128, 128, 8
        $region44: #{tpu_custom_call.1} parent=39 // pred_fallthru
          _
      $region40: #{tpu_custom_call.1} parent=5 // pred_fallthru
        _
      %p2769 = scmp.le.s32.totalorder 2, %s14
      // Predicated region
      $region45: #{tpu_custom_call.1} parent=5 // pred_check
        %p2770 = pneg %p2769
      $region46: #{tpu_custom_call.1} parent=5 // pred_check_branch
        %2772 = sbr.rel (%p2770) target = $region48
      $region47: #{tpu_custom_call.1} parent=5 // pred_region
        %s2773 = ssub.s32 %s14, 2
        // Predicated region
        $region49: #{tpu_custom_call.1} parent=47 // pred_check
          %p2774 = pneg %p153
        $region50: #{tpu_custom_call.1} parent=47 // pred_check_branch
          %2776 = sbr.rel (%p2774) target = $region52
        $region51: #{tpu_custom_call.1} parent=47 // pred_region
          %s2777 = sand.u32 %s138, 1
          %s2778 = scalar_lea.sflag [#allocation3], %s2777
          %s2779 = sand.u32 %s138, 1
          %s2780 = smul.addr %s2779, 256
          %s2781 = scalar_lea.vmem [#allocation2], %s2780
          %2782 = dma.done %s2778, 4096
        $region52: #{tpu_custom_call.1} parent=47 // pred_fallthru
          _
      $region48: #{tpu_custom_call.1} parent=5 // pred_fallthru
        _
    $region6: #{tpu_custom_call.1} parent=1 // loop_footer
      %s18 = sadd.s32 1, %s14
    $region7: #{tpu_custom_call.1} parent=1 // loop_footer_branch
      %13 = sbr.rel target = $region3
    $region8: #{tpu_custom_call.1} parent=1 // loop_exit
      _
    %2783 = vsyncpa [#allocation3], 1
    %s2784 = scalar_lea.sflag [#allocation3], 1
    %2785 = vsyncpa %s2784, 1

</llo_original>
